<compile_context>
chip_gen: v5e
topology: v5e:2x2
jax: 0.10.0
libtpu: 0.0.40
codegen_flags: <defaults>
</compile_context>

<pallas_src>
import math

import jax
import jax.numpy as jnp
from jax.experimental import pallas as pl
from jax.experimental.pallas import tpu as pltpu

# ----------------------------- configuration --------------------------------
B = 2          # batch
V = 8          # number of views == Mamba sequence length L
C = 3          # image channels
T = 2          # temporal frames
H = 8
W = 8

D_MODEL = 32
D_STATE = 16
D_CONV = 4
EXPAND = 2
D_INNER = EXPAND * D_MODEL            # 64
DT_RANK = math.ceil(D_MODEL / 16)     # 2
L = V
BL = B * L                            # 16 rows processed in one kernel call
XPROJ = D_INNER + 2 * D_STATE         # 96 = [dt composite | B | C]
OUT_PAD = 128                         # lane-padded out_proj width (unmasked vst)


# ----------------------------- kernel helpers -------------------------------
def _silu(x):
    # exp + approximate reciprocal both run on the EUP slot (VALU stays free).
    return x * pl.reciprocal(1.0 + jnp.exp(-x), approx=True)


def _softplus(x):
    # numerically-safe softplus without relying on log1p lowering
    return jnp.where(x > 20.0, x, jnp.log(1.0 + jnp.exp(jnp.minimum(x, 20.0))))


# ------------------------------ Mamba kernel ---------------------------------
def mamba_kernel(x_ref,       # (BL, D_MODEL)          features for the whole batch
                 w_in_ref,    # (D_MODEL, 2*D_INNER)   fused in_proj [x | z]
                 conv_w_ref,  # (D_CONV, D_INNER)      depthwise conv weight
                 xproj_ref,   # (D_INNER, XPROJ)       fused [w_dt@dt_proj | w_B | w_C]
                 aux_ref,     # (D_STATE+3, D_INNER)   [A_logT ; conv_b ; dt_bias ; D]
                 out_w_ref,   # (D_INNER, OUT_PAD)     out_proj, lane-padded to 128
                 out_ref,     # (BL, OUT_PAD)
                 dA_scr,      # (BL*D_STATE, D_INNER)  VMEM scratch
                 y_scr):      # (BL, D_INNER)          VMEM scratch
    u = x_ref[...]                                                     # (BL, D_MODEL)

    # --- fused in_proj: single 128-lane MXU matmul, split x/z by lane slice ---
    xz = jnp.dot(u, w_in_ref[...], preferred_element_type=jnp.float32)  # (BL, 128)
    x = xz[:, :D_INNER]                                                  # (BL, 64)
    z = xz[:, D_INNER:]                                                  # (BL, 64)

    # --- causal depthwise conv1d over the view axis: roll + mask, no pad-concat
    #     (mask also prevents mixing across the batch boundary of the flat layout)
    conv_w = conv_w_ref[...]                                             # (D_CONV, 64)
    conv_b = aux_ref[D_STATE:D_STATE + 1, :]                             # (1, 64)
    pos = jax.lax.broadcasted_iota(jnp.int32, (BL, D_INNER), 0) % L
    x_conv = jnp.zeros((BL, D_INNER), jnp.float32) + conv_b
    for j in range(D_CONV):
        shifted = x if j == 0 else pltpu.roll(x, shift=j, axis=0)
        shifted = jnp.where(pos >= j, shifted, 0.0)
        x_conv = x_conv + conv_w[D_CONV - 1 - j:D_CONV - j, :] * shifted
    xs = _silu(x_conv)                                                   # (BL, 64)

    # --- fused x_proj (+ composite dt projection): one matmul, slice dt/B/C ---
    dbc = jnp.dot(xs, xproj_ref[...], preferred_element_type=jnp.float32)   # (BL, 96)
    dt = _softplus(dbc[:, :D_INNER] + aux_ref[D_STATE + 1:D_STATE + 2, :])  # (BL, 64)
    Bm = dbc[:, D_INNER:D_INNER + D_STATE]                                  # (BL, 16)
    Cm = dbc[:, D_INNER + D_STATE:]                                         # (BL, 16)

    A_T = -jnp.exp(aux_ref[0:D_STATE, :])                                   # (16, 64)
    Dp = aux_ref[D_STATE + 2:D_STATE + 3, :]                                # (1, 64)

    # --- vectorized scan prologue: ONE exp pass over every (step, state) pair --
    A_big = jnp.concatenate([A_T] * BL, axis=0)                             # (BL*16, 64)
    dt_big = jnp.concatenate(
        [jnp.broadcast_to(dt[i:i + 1, :], (D_STATE, D_INNER)) for i in range(BL)],
        axis=0)                                                             # (BL*16, 64)
    dA_scr[...] = jnp.exp(dt_big * A_big)
    dtx = dt * xs                                                           # (BL, 64)
    B_cols = Bm.T                                                           # (16, BL)
    C_cols = Cm.T                                                           # (16, BL)

    # --- sequential selective-scan recurrence (state resets per batch element) --
    for b in range(B):
        h = jnp.zeros((D_STATE, D_INNER), jnp.float32)
        for t in range(L):
            i = b * L + t
            dA_i = dA_scr[i * D_STATE:(i + 1) * D_STATE, :]                 # (16, 64)
            h = dA_i * h + B_cols[:, i:i + 1] * dtx[i:i + 1, :]
            y_scr[i:i + 1, :] = jnp.sum(C_cols[:, i:i + 1] * h,
                                        axis=0, keepdims=True)

    # --- skip connection, gate, fused lane-padded out_proj (unmasked stores) ---
    y = (y_scr[...] + Dp * xs) * _silu(z)                                   # (BL, 64)
    out_ref[...] = jnp.dot(y, out_w_ref[...], preferred_element_type=jnp.float32)


def mamba_pallas(feats_flat, packed):
    """feats_flat: (B*V, d_model) f32 -> (B*V, d_model) f32 (single invocation)."""
    w_in, conv_w, xproj, aux, out_w_pad = packed
    out = pl.pallas_call(
        mamba_kernel,
        out_shape=jax.ShapeDtypeStruct((BL, OUT_PAD), jnp.float32),
        scratch_shapes=[
            pltpu.VMEM((BL * D_STATE, D_INNER), jnp.float32),   # dA for all steps
            pltpu.VMEM((BL, D_INNER), jnp.float32),             # y rows
        ],
    )(feats_flat, w_in, conv_w, xproj, aux, out_w_pad)
    return out[:, :D_MODEL]


# --------------------------- parameter construction --------------------------
def init_mamba_params(key):
    ks = jax.random.split(key, 8)
    s = 0.5
    w_in_x = jax.random.normal(ks[0], (D_MODEL, D_INNER), jnp.float32) * s
    w_in_z = jax.random.normal(ks[1], (D_MODEL, D_INNER), jnp.float32) * s
    conv_w = jax.random.normal(ks[2], (D_CONV, D_INNER), jnp.float32) * s
    conv_b = jnp.zeros((1, D_INNER), jnp.float32)
    w_dt = jax.random.normal(ks[3], (D_INNER, DT_RANK), jnp.float32) * s
    w_B = jax.random.normal(ks[4], (D_INNER, D_STATE), jnp.float32) * s
    w_C = jax.random.normal(ks[5], (D_INNER, D_STATE), jnp.float32) * s
    dtproj_w = jax.random.normal(ks[6], (DT_RANK, D_INNER), jnp.float32) * s
    dtproj_b = jnp.full((1, D_INNER), -2.0, jnp.float32)
    # Mamba-style init: A_log[c, s] = log(s + 1); stored transposed for the kernel.
    A_logT = jnp.log(jnp.broadcast_to(
        jnp.arange(1, D_STATE + 1, dtype=jnp.float32)[:, None],
        (D_STATE, D_INNER)))
    D_vec = jnp.ones((1, D_INNER), jnp.float32)
    out_w = jax.random.normal(ks[7], (D_INNER, D_MODEL), jnp.float32) * s
    return (w_in_x, w_in_z, conv_w, conv_b, w_dt, w_B, w_C,
            dtproj_w, dtproj_b, A_logT, D_vec, out_w)


def pack_mamba_params(raw):
    """Fuse / pack raw parameters into the 5 kernel weight inputs."""
    (w_in_x, w_in_z, conv_w, conv_b, w_dt, w_B, w_C,
     dtproj_w, dtproj_b, A_logT, D_vec, out_w) = raw
    w_in = jnp.concatenate([w_in_x, w_in_z], axis=1)                     # (32, 128)
    xproj = jnp.concatenate([w_dt @ dtproj_w, w_B, w_C], axis=1)         # (64, 96)
    aux = jnp.concatenate([A_logT, conv_b, dtproj_b, D_vec], axis=0)     # (19, 64)
    out_w_pad = jnp.zeros((D_INNER, OUT_PAD), jnp.float32).at[:, :D_MODEL].set(out_w)
    return (w_in, conv_w, xproj, aux, out_w_pad)


# ------------------------------ full forward ---------------------------------
def view_mamba_aggregate_forward(mvimages, backbone_w, packed_params):
    """Mirrors ViewMambaAggregate.forward; returns (pooled_view, features)."""
    Bn, Vn = mvimages.shape[0], mvimages.shape[1]

    # batch_tensor(dim=1, squeeze=True): (B, V, C, T, H, W) -> (B*V, C, T, H, W)
    batched = mvimages.reshape((Bn * Vn,) + mvimages.shape[2:])

    # TODO(synk): the real backbone is an external module passed to __init__;
    # synthesized here as mean-pool(T,H,W) + Linear(C, d_model).
    feats = jnp.mean(batched, axis=(2, 3, 4)) @ backbone_w              # (B*V, d_model)

    # self.mamba(features): one Pallas invocation over the whole (B*V, d_model) slab
    mamba_out = mamba_pallas(feats, packed_params).reshape(Bn, Vn, D_MODEL)

    pooled_view = mamba_out[:, -1, :]                                   # (B, d_model)
    features = mamba_out                                                # lifting_net = identity
    return pooled_view, features


# ------------------------- pure-JAX reference (unfused) -----------------------
def mamba_reference(feats_flat, raw):
    (w_in_x, w_in_z, conv_w, conv_b, w_dt, w_B, w_C,
     dtproj_w, dtproj_b, A_logT, D_vec, out_w) = raw
    A = -jnp.exp(A_logT)                                                # (d_state, d_inner)

    def one_seq(u):                                                     # u: (L, D_MODEL)
        x = u @ w_in_x
        z = u @ w_in_z
        x_pad = jnp.concatenate(
            [jnp.zeros((D_CONV - 1, D_INNER), jnp.float32), x], axis=0)
        x_conv = conv_b + sum(conv_w[k:k + 1, :] * x_pad[k:k + L, :]
                              for k in range(D_CONV))
        xs = x_conv * jax.nn.sigmoid(x_conv)
        dt = jax.nn.softplus(xs @ w_dt @ dtproj_w + dtproj_b)
        Bm = xs @ w_B
        Cm = xs @ w_C
        h = jnp.zeros((D_STATE, D_INNER), jnp.float32)
        ys = []
        for t in range(L):
            h = jnp.exp(dt[t] * A) * h + Bm[t][:, None] * (dt[t] * xs[t])
            ys.append(jnp.sum(Cm[t][:, None] * h, axis=0) + D_vec[0] * xs[t])
        y = jnp.stack(ys) * (z * jax.nn.sigmoid(z))
        return y @ out_w

    return jax.vmap(one_seq)(feats_flat.reshape(B, L, D_MODEL)).reshape(BL, D_MODEL)


# ---------------------------------- main -------------------------------------
if __name__ == "__main__":
    key = jax.random.PRNGKey(0)
    k_img, k_bb, k_p = jax.random.split(key, 3)

    mvimages = jax.random.normal(k_img, (B, V, C, T, H, W), jnp.float32)
    backbone_w = jax.random.normal(k_bb, (C, D_MODEL), jnp.float32)
    raw_params = init_mamba_params(k_p)
    packed_params = pack_mamba_params(raw_params)

    pooled, feats = view_mamba_aggregate_forward(mvimages, backbone_w, packed_params)
    jax.block_until_ready((pooled, feats))

    assert pooled.shape == (B, D_MODEL)
    assert feats.shape == (B, V, D_MODEL)
    assert bool(jnp.all(jnp.isfinite(pooled))) and bool(jnp.all(jnp.isfinite(feats)))

    # sanity check the fused kernel against the unfused pure-JAX module math
    feats_flat = jnp.mean(
        mvimages.reshape((B * V,) + mvimages.shape[2:]), axis=(2, 3, 4)) @ backbone_w
    ref = mamba_reference(feats_flat, raw_params)
    got = feats.reshape(BL, D_MODEL)
    err = float(jnp.max(jnp.abs(got - ref)))
    tol = 5e-2 * max(1.0, float(jnp.max(jnp.abs(ref))))
    assert err < tol, f"kernel/reference mismatch: {err} (tol {tol})"

    print("KERNEL_OK")
</pallas_src>

<mosaic_0001>
module attributes {stable_mosaic.version = 11 : i64} {
  func.func @mamba_kernel(%arg0: memref<16x32xf32, #tpu.memory_space<vmem>>, %arg1: memref<32x128xf32, #tpu.memory_space<vmem>>, %arg2: memref<4x64xf32, #tpu.memory_space<vmem>>, %arg3: memref<64x96xf32, #tpu.memory_space<vmem>>, %arg4: memref<19x64xf32, #tpu.memory_space<vmem>>, %arg5: memref<64x128xf32, #tpu.memory_space<vmem>>, %arg6: memref<16x128xf32, #tpu.memory_space<vmem>>, %arg7: memref<256x64xf32, #tpu.memory_space<vmem>>, %arg8: memref<16x64xf32, #tpu.memory_space<vmem>>) attributes {dimension_semantics = [], scalar_prefetch = 0 : i64, scratch_operands = 2 : i64, tpu.core_type = #tpu.core_type<tc>} {
    %c0 = arith.constant 0 : index
    %c0_0 = arith.constant 0 : index
    %0 = vector.load %arg0[%c0, %c0_0] : memref<16x32xf32, #tpu.memory_space<vmem>>, vector<16x32xf32>
    %c0_1 = arith.constant 0 : index
    %c0_2 = arith.constant 0 : index
    %1 = vector.load %arg1[%c0_1, %c0_2] : memref<32x128xf32, #tpu.memory_space<vmem>>, vector<32x128xf32>
    %cst = arith.constant dense<0.000000e+00> : vector<16x128xf32>
    %2 = tpu.matmul %0, %1, %cst {dimension_numbers = #tpu.dot_dimension_numbers<[1], [0], [0], [1], [0, 0, 1, 1], [], []>} : vector<16x32xf32>, vector<32x128xf32>, vector<16x128xf32> -> vector<16x128xf32>
    %3 = vector.extract_strided_slice %2 {offsets = [0, 0], sizes = [16, 64], strides = [1, 1]} : vector<16x128xf32> to vector<16x64xf32>
    %4 = vector.extract_strided_slice %2 {offsets = [0, 64], sizes = [16, 64], strides = [1, 1]} : vector<16x128xf32> to vector<16x64xf32>
    %c0_3 = arith.constant 0 : index
    %c0_4 = arith.constant 0 : index
    %5 = vector.load %arg2[%c0_3, %c0_4] : memref<4x64xf32, #tpu.memory_space<vmem>>, vector<4x64xf32>
    %c16 = arith.constant 16 : index
    %c0_5 = arith.constant 0 : index
    %6 = vector.load %arg4[%c16, %c0_5] : memref<19x64xf32, #tpu.memory_space<vmem>>, vector<1x64xf32>
    %7 = tpu.iota {dimensions = array<i32: 0>} : vector<16x64xi32>
    %c8_i32 = arith.constant 8 : i32
    %c0_i32 = arith.constant 0 : i32
    %8 = arith.cmpi eq, %c8_i32, %c0_i32 : i32
    %c1_i32 = arith.constant 1 : i32
    %9 = arith.select %8, %c1_i32, %c8_i32 : i32
    %10 = vector.broadcast %9 : i32 to vector<16x64xi32>
    %11 = arith.remsi %7, %10 : vector<16x64xi32>
    %c0_i32_6 = arith.constant 0 : i32
    %12 = vector.broadcast %c0_i32_6 : i32 to vector<16x64xi32>
    %13 = arith.cmpi ne, %11, %12 : vector<16x64xi32>
    %c0_i32_7 = arith.constant 0 : i32
    %14 = vector.broadcast %c0_i32_7 : i32 to vector<16x64xi32>
    %15 = arith.cmpi slt, %11, %14 : vector<16x64xi32>
    %c0_i32_8 = arith.constant 0 : i32
    %16 = arith.cmpi slt, %9, %c0_i32_8 : i32
    %17 = vector.broadcast %16 : i1 to vector<16x64xi1>
    %18 = vector.broadcast %17 : vector<16x64xi1> to vector<16x64xi1>
    %19 = arith.xori %15, %18 : vector<16x64xi1>
    %20 = arith.andi %19, %13 : vector<16x64xi1>
    %21 = vector.broadcast %9 : i32 to vector<16x64xi32>
    %22 = arith.addi %11, %21 : vector<16x64xi32>
    %23 = arith.select %20, %22, %11 : vector<16x64xi1>, vector<16x64xi32>
    %cst_9 = arith.constant 0.000000e+00 : f32
    %24 = vector.broadcast %cst_9 : f32 to vector<16x64xf32>
    %25 = vector.broadcast %6 : vector<1x64xf32> to vector<16x64xf32>
    %26 = arith.addf %24, %25 : vector<16x64xf32>
    %c0_i32_10 = arith.constant 0 : i32
    %27 = vector.broadcast %c0_i32_10 : i32 to vector<16x64xi32>
    %28 = arith.cmpi sge, %23, %27 : vector<16x64xi32>
    %cst_11 = arith.constant 0.000000e+00 : f32
    %29 = vector.broadcast %cst_11 : f32 to vector<16x64xf32>
    %30 = arith.select %28, %3, %29 : vector<16x64xi1>, vector<16x64xf32>
    %31 = vector.extract_strided_slice %5 {offsets = [3, 0], sizes = [1, 64], strides = [1, 1]} : vector<4x64xf32> to vector<1x64xf32>
    %32 = vector.broadcast %31 : vector<1x64xf32> to vector<16x64xf32>
    %33 = arith.mulf %32, %30 : vector<16x64xf32>
    %34 = arith.addf %26, %33 : vector<16x64xf32>
    %c1_i32_12 = arith.constant 1 : i32
    %35 = tpu.dynamic_rotate %3 by %c1_i32_12 dim 0 : vector<16x64xf32>, i32 -> vector<16x64xf32>
    %c1_i32_13 = arith.constant 1 : i32
    %36 = vector.broadcast %c1_i32_13 : i32 to vector<16x64xi32>
    %37 = arith.cmpi sge, %23, %36 : vector<16x64xi32>
    %cst_14 = arith.constant 0.000000e+00 : f32
    %38 = vector.broadcast %cst_14 : f32 to vector<16x64xf32>
    %39 = arith.select %37, %35, %38 : vector<16x64xi1>, vector<16x64xf32>
    %40 = vector.extract_strided_slice %5 {offsets = [2, 0], sizes = [1, 64], strides = [1, 1]} : vector<4x64xf32> to vector<1x64xf32>
    %41 = vector.broadcast %40 : vector<1x64xf32> to vector<16x64xf32>
    %42 = arith.mulf %41, %39 : vector<16x64xf32>
    %43 = arith.addf %34, %42 : vector<16x64xf32>
    %c2_i32 = arith.constant 2 : i32
    %44 = tpu.dynamic_rotate %3 by %c2_i32 dim 0 : vector<16x64xf32>, i32 -> vector<16x64xf32>
    %c2_i32_15 = arith.constant 2 : i32
    %45 = vector.broadcast %c2_i32_15 : i32 to vector<16x64xi32>
    %46 = arith.cmpi sge, %23, %45 : vector<16x64xi32>
    %cst_16 = arith.constant 0.000000e+00 : f32
    %47 = vector.broadcast %cst_16 : f32 to vector<16x64xf32>
    %48 = arith.select %46, %44, %47 : vector<16x64xi1>, vector<16x64xf32>
    %49 = vector.extract_strided_slice %5 {offsets = [1, 0], sizes = [1, 64], strides = [1, 1]} : vector<4x64xf32> to vector<1x64xf32>
    %50 = vector.broadcast %49 : vector<1x64xf32> to vector<16x64xf32>
    %51 = arith.mulf %50, %48 : vector<16x64xf32>
    %52 = arith.addf %43, %51 : vector<16x64xf32>
    %c3_i32 = arith.constant 3 : i32
    %53 = tpu.dynamic_rotate %3 by %c3_i32 dim 0 : vector<16x64xf32>, i32 -> vector<16x64xf32>
    %c3_i32_17 = arith.constant 3 : i32
    %54 = vector.broadcast %c3_i32_17 : i32 to vector<16x64xi32>
    %55 = arith.cmpi sge, %23, %54 : vector<16x64xi32>
    %cst_18 = arith.constant 0.000000e+00 : f32
    %56 = vector.broadcast %cst_18 : f32 to vector<16x64xf32>
    %57 = arith.select %55, %53, %56 : vector<16x64xi1>, vector<16x64xf32>
    %58 = vector.extract_strided_slice %5 {offsets = [0, 0], sizes = [1, 64], strides = [1, 1]} : vector<4x64xf32> to vector<1x64xf32>
    %59 = vector.broadcast %58 : vector<1x64xf32> to vector<16x64xf32>
    %60 = arith.mulf %59, %57 : vector<16x64xf32>
    %61 = arith.addf %52, %60 : vector<16x64xf32>
    %cst_19 = arith.constant 0.000000e+00 : f32
    %62 = vector.broadcast %cst_19 : f32 to vector<16x64xf32>
    %63 = arith.subf %62, %61 : vector<16x64xf32>
    %64 = math.exp %63 : vector<16x64xf32>
    %cst_20 = arith.constant 1.000000e+00 : f32
    %65 = vector.broadcast %cst_20 : f32 to vector<16x64xf32>
    %66 = arith.addf %65, %64 : vector<16x64xf32>
    %67 = tpu.reciprocal %66 {approx = true} : vector<16x64xf32> -> vector<16x64xf32>
    %68 = arith.mulf %61, %67 : vector<16x64xf32>
    %c0_21 = arith.constant 0 : index
    %c0_22 = arith.constant 0 : index
    %69 = vector.load %arg3[%c0_21, %c0_22] : memref<64x96xf32, #tpu.memory_space<vmem>>, vector<64x96xf32>
    %cst_23 = arith.constant dense<0.000000e+00> : vector<16x96xf32>
    %70 = tpu.matmul %68, %69, %cst_23 {dimension_numbers = #tpu.dot_dimension_numbers<[1], [0], [0], [1], [0, 0, 1, 1], [], []>} : vector<16x64xf32>, vector<64x96xf32>, vector<16x96xf32> -> vector<16x96xf32>
    %71 = vector.extract_strided_slice %70 {offsets = [0, 0], sizes = [16, 64], strides = [1, 1]} : vector<16x96xf32> to vector<16x64xf32>
    %c17 = arith.constant 17 : index
    %c0_24 = arith.constant 0 : index
    %72 = vector.load %arg4[%c17, %c0_24] : memref<19x64xf32, #tpu.memory_space<vmem>>, vector<1x64xf32>
    %73 = vector.broadcast %72 : vector<1x64xf32> to vector<16x64xf32>
    %74 = arith.addf %71, %73 : vector<16x64xf32>
    %cst_25 = arith.constant 2.000000e+01 : f32
    %75 = vector.broadcast %cst_25 : f32 to vector<16x64xf32>
    %76 = arith.cmpf ogt, %74, %75 : vector<16x64xf32>
    %cst_26 = arith.constant 2.000000e+01 : f32
    %77 = vector.broadcast %cst_26 : f32 to vector<16x64xf32>
    %78 = arith.minimumf %74, %77 : vector<16x64xf32>
    %79 = math.exp %78 : vector<16x64xf32>
    %cst_27 = arith.constant 1.000000e+00 : f32
    %80 = vector.broadcast %cst_27 : f32 to vector<16x64xf32>
    %81 = arith.addf %80, %79 : vector<16x64xf32>
    %82 = math.log %81 : vector<16x64xf32>
    %83 = arith.select %76, %74, %82 : vector<16x64xi1>, vector<16x64xf32>
    %84 = vector.extract_strided_slice %70 {offsets = [0, 64], sizes = [16, 16], strides = [1, 1]} : vector<16x96xf32> to vector<16x16xf32>
    %85 = vector.extract_strided_slice %70 {offsets = [0, 80], sizes = [16, 16], strides = [1, 1]} : vector<16x96xf32> to vector<16x16xf32>
    %c0_28 = arith.constant 0 : index
    %c0_29 = arith.constant 0 : index
    %86 = vector.load %arg4[%c0_28, %c0_29] : memref<19x64xf32, #tpu.memory_space<vmem>>, vector<16x64xf32>
    %87 = math.exp %86 : vector<16x64xf32>
    %cst_30 = arith.constant 0.000000e+00 : f32
    %88 = vector.broadcast %cst_30 : f32 to vector<16x64xf32>
    %89 = arith.subf %88, %87 : vector<16x64xf32>
    %c18 = arith.constant 18 : index
    %c0_31 = arith.constant 0 : index
    %90 = vector.load %arg4[%c18, %c0_31] : memref<19x64xf32, #tpu.memory_space<vmem>>, vector<1x64xf32>
    %91 = tpu.concatenate %89, %89, %89, %89, %89, %89, %89, %89, %89, %89, %89, %89, %89, %89, %89, %89 in 0 : vector<16x64xf32>, vector<16x64xf32>, vector<16x64xf32>, vector<16x64xf32>, vector<16x64xf32>, vector<16x64xf32>, vector<16x64xf32>, vector<16x64xf32>, vector<16x64xf32>, vector<16x64xf32>, vector<16x64xf32>, vector<16x64xf32>, vector<16x64xf32>, vector<16x64xf32>, vector<16x64xf32>, vector<16x64xf32> -> vector<256x64xf32>
    %92 = vector.extract_strided_slice %83 {offsets = [0, 0], sizes = [1, 64], strides = [1, 1]} : vector<16x64xf32> to vector<1x64xf32>
    %93 = vector.shape_cast %92 : vector<1x64xf32> to vector<1x64xf32>
    %94 = vector.broadcast %93 : vector<1x64xf32> to vector<16x64xf32>
    %95 = vector.extract_strided_slice %83 {offsets = [1, 0], sizes = [1, 64], strides = [1, 1]} : vector<16x64xf32> to vector<1x64xf32>
    %96 = vector.shape_cast %95 : vector<1x64xf32> to vector<1x64xf32>
    %97 = vector.broadcast %96 : vector<1x64xf32> to vector<16x64xf32>
    %98 = vector.extract_strided_slice %83 {offsets = [2, 0], sizes = [1, 64], strides = [1, 1]} : vector<16x64xf32> to vector<1x64xf32>
    %99 = vector.shape_cast %98 : vector<1x64xf32> to vector<1x64xf32>
    %100 = vector.broadcast %99 : vector<1x64xf32> to vector<16x64xf32>
    %101 = vector.extract_strided_slice %83 {offsets = [3, 0], sizes = [1, 64], strides = [1, 1]} : vector<16x64xf32> to vector<1x64xf32>
    %102 = vector.shape_cast %101 : vector<1x64xf32> to vector<1x64xf32>
    %103 = vector.broadcast %102 : vector<1x64xf32> to vector<16x64xf32>
    %104 = vector.extract_strided_slice %83 {offsets = [4, 0], sizes = [1, 64], strides = [1, 1]} : vector<16x64xf32> to vector<1x64xf32>
    %105 = vector.shape_cast %104 : vector<1x64xf32> to vector<1x64xf32>
    %106 = vector.broadcast %105 : vector<1x64xf32> to vector<16x64xf32>
    %107 = vector.extract_strided_slice %83 {offsets = [5, 0], sizes = [1, 64], strides = [1, 1]} : vector<16x64xf32> to vector<1x64xf32>
    %108 = vector.shape_cast %107 : vector<1x64xf32> to vector<1x64xf32>
    %109 = vector.broadcast %108 : vector<1x64xf32> to vector<16x64xf32>
    %110 = vector.extract_strided_slice %83 {offsets = [6, 0], sizes = [1, 64], strides = [1, 1]} : vector<16x64xf32> to vector<1x64xf32>
    %111 = vector.shape_cast %110 : vector<1x64xf32> to vector<1x64xf32>
    %112 = vector.broadcast %111 : vector<1x64xf32> to vector<16x64xf32>
    %113 = vector.extract_strided_slice %83 {offsets = [7, 0], sizes = [1, 64], strides = [1, 1]} : vector<16x64xf32> to vector<1x64xf32>
    %114 = vector.shape_cast %113 : vector<1x64xf32> to vector<1x64xf32>
    %115 = vector.broadcast %114 : vector<1x64xf32> to vector<16x64xf32>
    %116 = vector.extract_strided_slice %83 {offsets = [8, 0], sizes = [1, 64], strides = [1, 1]} : vector<16x64xf32> to vector<1x64xf32>
    %117 = vector.shape_cast %116 : vector<1x64xf32> to vector<1x64xf32>
    %118 = vector.broadcast %117 : vector<1x64xf32> to vector<16x64xf32>
    %119 = vector.extract_strided_slice %83 {offsets = [9, 0], sizes = [1, 64], strides = [1, 1]} : vector<16x64xf32> to vector<1x64xf32>
    %120 = vector.shape_cast %119 : vector<1x64xf32> to vector<1x64xf32>
    %121 = vector.broadcast %120 : vector<1x64xf32> to vector<16x64xf32>
    %122 = vector.extract_strided_slice %83 {offsets = [10, 0], sizes = [1, 64], strides = [1, 1]} : vector<16x64xf32> to vector<1x64xf32>
    %123 = vector.shape_cast %122 : vector<1x64xf32> to vector<1x64xf32>
    %124 = vector.broadcast %123 : vector<1x64xf32> to vector<16x64xf32>
    %125 = vector.extract_strided_slice %83 {offsets = [11, 0], sizes = [1, 64], strides = [1, 1]} : vector<16x64xf32> to vector<1x64xf32>
    %126 = vector.shape_cast %125 : vector<1x64xf32> to vector<1x64xf32>
    %127 = vector.broadcast %126 : vector<1x64xf32> to vector<16x64xf32>
    %128 = vector.extract_strided_slice %83 {offsets = [12, 0], sizes = [1, 64], strides = [1, 1]} : vector<16x64xf32> to vector<1x64xf32>
    %129 = vector.shape_cast %128 : vector<1x64xf32> to vector<1x64xf32>
    %130 = vector.broadcast %129 : vector<1x64xf32> to vector<16x64xf32>
    %131 = vector.extract_strided_slice %83 {offsets = [13, 0], sizes = [1, 64], strides = [1, 1]} : vector<16x64xf32> to vector<1x64xf32>
    %132 = vector.shape_cast %131 : vector<1x64xf32> to vector<1x64xf32>
    %133 = vector.broadcast %132 : vector<1x64xf32> to vector<16x64xf32>
    %134 = vector.extract_strided_slice %83 {offsets = [14, 0], sizes = [1, 64], strides = [1, 1]} : vector<16x64xf32> to vector<1x64xf32>
    %135 = vector.shape_cast %134 : vector<1x64xf32> to vector<1x64xf32>
    %136 = vector.broadcast %135 : vector<1x64xf32> to vector<16x64xf32>
    %137 = vector.extract_strided_slice %83 {offsets = [15, 0], sizes = [1, 64], strides = [1, 1]} : vector<16x64xf32> to vector<1x64xf32>
    %138 = vector.shape_cast %137 : vector<1x64xf32> to vector<1x64xf32>
    %139 = vector.broadcast %138 : vector<1x64xf32> to vector<16x64xf32>
    %140 = tpu.concatenate %94, %97, %100, %103, %106, %109, %112, %115, %118, %121, %124, %127, %130, %133, %136, %139 in 0 : vector<16x64xf32>, vector<16x64xf32>, vector<16x64xf32>, vector<16x64xf32>, vector<16x64xf32>, vector<16x64xf32>, vector<16x64xf32>, vector<16x64xf32>, vector<16x64xf32>, vector<16x64xf32>, vector<16x64xf32>, vector<16x64xf32>, vector<16x64xf32>, vector<16x64xf32>, vector<16x64xf32>, vector<16x64xf32> -> vector<256x64xf32>
    %141 = arith.mulf %140, %91 : vector<256x64xf32>
    %142 = math.exp %141 : vector<256x64xf32>
    %c0_32 = arith.constant 0 : index
    %c0_33 = arith.constant 0 : index
    %143 = vector.load %arg7[%c0_32, %c0_33] : memref<256x64xf32, #tpu.memory_space<vmem>>, vector<256x64xf32>
    tpu.vector_store %arg7[%c0_32, %c0_33], %142 {strides = array<i32>} : memref<256x64xf32, #tpu.memory_space<vmem>>, vector<256x64xf32>,
    %144 = arith.mulf %83, %68 : vector<16x64xf32>
    %145 = tpu.transpose %84, [1, 0] : vector<16x16xf32> -> vector<16x16xf32>
    %146 = tpu.transpose %85, [1, 0] : vector<16x16xf32> -> vector<16x16xf32>
    %cst_34 = arith.constant 0.000000e+00 : f32
    %147 = vector.broadcast %cst_34 : f32 to vector<16x64xf32>
    %c0_35 = arith.constant 0 : index
    %c0_36 = arith.constant 0 : index
    %148 = vector.load %arg7[%c0_35, %c0_36] : memref<256x64xf32, #tpu.memory_space<vmem>>, vector<16x64xf32>
    %149 = arith.mulf %148, %147 : vector<16x64xf32>
    %150 = vector.extract_strided_slice %145 {offsets = [0, 0], sizes = [16, 1], strides = [1, 1]} : vector<16x16xf32> to vector<16x1xf32>
    %151 = vector.extract_strided_slice %144 {offsets = [0, 0], sizes = [1, 64], strides = [1, 1]} : vector<16x64xf32> to vector<1x64xf32>
    %152 = vector.broadcast %150 : vector<16x1xf32> to vector<16x64xf32>
    %153 = vector.broadcast %151 : vector<1x64xf32> to vector<16x64xf32>
    %154 = arith.mulf %152, %153 : vector<16x64xf32>
    %155 = arith.addf %149, %154 : vector<16x64xf32>
    %156 = vector.extract_strided_slice %146 {offsets = [0, 0], sizes = [16, 1], strides = [1, 1]} : vector<16x16xf32> to vector<16x1xf32>
    %157 = vector.broadcast %156 : vector<16x1xf32> to vector<16x64xf32>
    %158 = arith.mulf %157, %155 : vector<16x64xf32>
    %cst_37 = arith.constant dense<0.000000e+00> : vector<64xf32>
    %159 = vector.multi_reduction <add>, %158, %cst_37 [0] : vector<16x64xf32> to vector<64xf32>
    %160 = vector.shape_cast %159 : vector<64xf32> to vector<1x64xf32>
    %c0_38 = arith.constant 0 : index
    %c0_39 = arith.constant 0 : index
    %161 = vector.load %arg8[%c0_38, %c0_39] : memref<16x64xf32, #tpu.memory_space<vmem>>, vector<1x64xf32>
    tpu.vector_store %arg8[%c0_38, %c0_39], %160 {strides = array<i32>} : memref<16x64xf32, #tpu.memory_space<vmem>>, vector<1x64xf32>,
    %c16_40 = arith.constant 16 : index
    %c0_41 = arith.constant 0 : index
    %162 = vector.load %arg7[%c16_40, %c0_41] : memref<256x64xf32, #tpu.memory_space<vmem>>, vector<16x64xf32>
    %163 = arith.mulf %162, %155 : vector<16x64xf32>
    %164 = vector.extract_strided_slice %145 {offsets = [0, 1], sizes = [16, 1], strides = [1, 1]} : vector<16x16xf32> to vector<16x1xf32>
    %165 = vector.extract_strided_slice %144 {offsets = [1, 0], sizes = [1, 64], strides = [1, 1]} : vector<16x64xf32> to vector<1x64xf32>
    %166 = vector.broadcast %164 : vector<16x1xf32> to vector<16x64xf32>
    %167 = vector.broadcast %165 : vector<1x64xf32> to vector<16x64xf32>
    %168 = arith.mulf %166, %167 : vector<16x64xf32>
    %169 = arith.addf %163, %168 : vector<16x64xf32>
    %170 = vector.extract_strided_slice %146 {offsets = [0, 1], sizes = [16, 1], strides = [1, 1]} : vector<16x16xf32> to vector<16x1xf32>
    %171 = vector.broadcast %170 : vector<16x1xf32> to vector<16x64xf32>
    %172 = arith.mulf %171, %169 : vector<16x64xf32>
    %cst_42 = arith.constant dense<0.000000e+00> : vector<64xf32>
    %173 = vector.multi_reduction <add>, %172, %cst_42 [0] : vector<16x64xf32> to vector<64xf32>
    %174 = vector.shape_cast %173 : vector<64xf32> to vector<1x64xf32>
    %c1 = arith.constant 1 : index
    %c0_43 = arith.constant 0 : index
    %175 = vector.load %arg8[%c1, %c0_43] : memref<16x64xf32, #tpu.memory_space<vmem>>, vector<1x64xf32>
    tpu.vector_store %arg8[%c1, %c0_43], %174 {strides = array<i32>} : memref<16x64xf32, #tpu.memory_space<vmem>>, vector<1x64xf32>,
    %c32 = arith.constant 32 : index
    %c0_44 = arith.constant 0 : index
    %176 = vector.load %arg7[%c32, %c0_44] : memref<256x64xf32, #tpu.memory_space<vmem>>, vector<16x64xf32>
    %177 = arith.mulf %176, %169 : vector<16x64xf32>
    %178 = vector.extract_strided_slice %145 {offsets = [0, 2], sizes = [16, 1], strides = [1, 1]} : vector<16x16xf32> to vector<16x1xf32>
    %179 = vector.extract_strided_slice %144 {offsets = [2, 0], sizes = [1, 64], strides = [1, 1]} : vector<16x64xf32> to vector<1x64xf32>
    %180 = vector.broadcast %178 : vector<16x1xf32> to vector<16x64xf32>
    %181 = vector.broadcast %179 : vector<1x64xf32> to vector<16x64xf32>
    %182 = arith.mulf %180, %181 : vector<16x64xf32>
    %183 = arith.addf %177, %182 : vector<16x64xf32>
    %184 = vector.extract_strided_slice %146 {offsets = [0, 2], sizes = [16, 1], strides = [1, 1]} : vector<16x16xf32> to vector<16x1xf32>
    %185 = vector.broadcast %184 : vector<16x1xf32> to vector<16x64xf32>
    %186 = arith.mulf %185, %183 : vector<16x64xf32>
    %cst_45 = arith.constant dense<0.000000e+00> : vector<64xf32>
    %187 = vector.multi_reduction <add>, %186, %cst_45 [0] : vector<16x64xf32> to vector<64xf32>
    %188 = vector.shape_cast %187 : vector<64xf32> to vector<1x64xf32>
    %c2 = arith.constant 2 : index
    %c0_46 = arith.constant 0 : index
    %189 = vector.load %arg8[%c2, %c0_46] : memref<16x64xf32, #tpu.memory_space<vmem>>, vector<1x64xf32>
    tpu.vector_store %arg8[%c2, %c0_46], %188 {strides = array<i32>} : memref<16x64xf32, #tpu.memory_space<vmem>>, vector<1x64xf32>,
    %c48 = arith.constant 48 : index
    %c0_47 = arith.constant 0 : index
    %190 = vector.load %arg7[%c48, %c0_47] : memref<256x64xf32, #tpu.memory_space<vmem>>, vector<16x64xf32>
    %191 = arith.mulf %190, %183 : vector<16x64xf32>
    %192 = vector.extract_strided_slice %145 {offsets = [0, 3], sizes = [16, 1], strides = [1, 1]} : vector<16x16xf32> to vector<16x1xf32>
    %193 = vector.extract_strided_slice %144 {offsets = [3, 0], sizes = [1, 64], strides = [1, 1]} : vector<16x64xf32> to vector<1x64xf32>
    %194 = vector.broadcast %192 : vector<16x1xf32> to vector<16x64xf32>
    %195 = vector.broadcast %193 : vector<1x64xf32> to vector<16x64xf32>
    %196 = arith.mulf %194, %195 : vector<16x64xf32>
    %197 = arith.addf %191, %196 : vector<16x64xf32>
    %198 = vector.extract_strided_slice %146 {offsets = [0, 3], sizes = [16, 1], strides = [1, 1]} : vector<16x16xf32> to vector<16x1xf32>
    %199 = vector.broadcast %198 : vector<16x1xf32> to vector<16x64xf32>
    %200 = arith.mulf %199, %197 : vector<16x64xf32>
    %cst_48 = arith.constant dense<0.000000e+00> : vector<64xf32>
    %201 = vector.multi_reduction <add>, %200, %cst_48 [0] : vector<16x64xf32> to vector<64xf32>
    %202 = vector.shape_cast %201 : vector<64xf32> to vector<1x64xf32>
    %c3 = arith.constant 3 : index
    %c0_49 = arith.constant 0 : index
    %203 = vector.load %arg8[%c3, %c0_49] : memref<16x64xf32, #tpu.memory_space<vmem>>, vector<1x64xf32>
    tpu.vector_store %arg8[%c3, %c0_49], %202 {strides = array<i32>} : memref<16x64xf32, #tpu.memory_space<vmem>>, vector<1x64xf32>,
    %c64 = arith.constant 64 : index
    %c0_50 = arith.constant 0 : index
    %204 = vector.load %arg7[%c64, %c0_50] : memref<256x64xf32, #tpu.memory_space<vmem>>, vector<16x64xf32>
    %205 = arith.mulf %204, %197 : vector<16x64xf32>
    %206 = vector.extract_strided_slice %145 {offsets = [0, 4], sizes = [16, 1], strides = [1, 1]} : vector<16x16xf32> to vector<16x1xf32>
    %207 = vector.extract_strided_slice %144 {offsets = [4, 0], sizes = [1, 64], strides = [1, 1]} : vector<16x64xf32> to vector<1x64xf32>
    %208 = vector.broadcast %206 : vector<16x1xf32> to vector<16x64xf32>
    %209 = vector.broadcast %207 : vector<1x64xf32> to vector<16x64xf32>
    %210 = arith.mulf %208, %209 : vector<16x64xf32>
    %211 = arith.addf %205, %210 : vector<16x64xf32>
    %212 = vector.extract_strided_slice %146 {offsets = [0, 4], sizes = [16, 1], strides = [1, 1]} : vector<16x16xf32> to vector<16x1xf32>
    %213 = vector.broadcast %212 : vector<16x1xf32> to vector<16x64xf32>
    %214 = arith.mulf %213, %211 : vector<16x64xf32>
    %cst_51 = arith.constant dense<0.000000e+00> : vector<64xf32>
    %215 = vector.multi_reduction <add>, %214, %cst_51 [0] : vector<16x64xf32> to vector<64xf32>
    %216 = vector.shape_cast %215 : vector<64xf32> to vector<1x64xf32>
    %c4 = arith.constant 4 : index
    %c0_52 = arith.constant 0 : index
    %217 = vector.load %arg8[%c4, %c0_52] : memref<16x64xf32, #tpu.memory_space<vmem>>, vector<1x64xf32>
    tpu.vector_store %arg8[%c4, %c0_52], %216 {strides = array<i32>} : memref<16x64xf32, #tpu.memory_space<vmem>>, vector<1x64xf32>,
    %c80 = arith.constant 80 : index
    %c0_53 = arith.constant 0 : index
    %218 = vector.load %arg7[%c80, %c0_53] : memref<256x64xf32, #tpu.memory_space<vmem>>, vector<16x64xf32>
    %219 = arith.mulf %218, %211 : vector<16x64xf32>
    %220 = vector.extract_strided_slice %145 {offsets = [0, 5], sizes = [16, 1], strides = [1, 1]} : vector<16x16xf32> to vector<16x1xf32>
    %221 = vector.extract_strided_slice %144 {offsets = [5, 0], sizes = [1, 64], strides = [1, 1]} : vector<16x64xf32> to vector<1x64xf32>
    %222 = vector.broadcast %220 : vector<16x1xf32> to vector<16x64xf32>
    %223 = vector.broadcast %221 : vector<1x64xf32> to vector<16x64xf32>
    %224 = arith.mulf %222, %223 : vector<16x64xf32>
    %225 = arith.addf %219, %224 : vector<16x64xf32>
    %226 = vector.extract_strided_slice %146 {offsets = [0, 5], sizes = [16, 1], strides = [1, 1]} : vector<16x16xf32> to vector<16x1xf32>
    %227 = vector.broadcast %226 : vector<16x1xf32> to vector<16x64xf32>
    %228 = arith.mulf %227, %225 : vector<16x64xf32>
    %cst_54 = arith.constant dense<0.000000e+00> : vector<64xf32>
    %229 = vector.multi_reduction <add>, %228, %cst_54 [0] : vector<16x64xf32> to vector<64xf32>
    %230 = vector.shape_cast %229 : vector<64xf32> to vector<1x64xf32>
    %c5 = arith.constant 5 : index
    %c0_55 = arith.constant 0 : index
    %231 = vector.load %arg8[%c5, %c0_55] : memref<16x64xf32, #tpu.memory_space<vmem>>, vector<1x64xf32>
    tpu.vector_store %arg8[%c5, %c0_55], %230 {strides = array<i32>} : memref<16x64xf32, #tpu.memory_space<vmem>>, vector<1x64xf32>,
    %c96 = arith.constant 96 : index
    %c0_56 = arith.constant 0 : index
    %232 = vector.load %arg7[%c96, %c0_56] : memref<256x64xf32, #tpu.memory_space<vmem>>, vector<16x64xf32>
    %233 = arith.mulf %232, %225 : vector<16x64xf32>
    %234 = vector.extract_strided_slice %145 {offsets = [0, 6], sizes = [16, 1], strides = [1, 1]} : vector<16x16xf32> to vector<16x1xf32>
    %235 = vector.extract_strided_slice %144 {offsets = [6, 0], sizes = [1, 64], strides = [1, 1]} : vector<16x64xf32> to vector<1x64xf32>
    %236 = vector.broadcast %234 : vector<16x1xf32> to vector<16x64xf32>
    %237 = vector.broadcast %235 : vector<1x64xf32> to vector<16x64xf32>
    %238 = arith.mulf %236, %237 : vector<16x64xf32>
    %239 = arith.addf %233, %238 : vector<16x64xf32>
    %240 = vector.extract_strided_slice %146 {offsets = [0, 6], sizes = [16, 1], strides = [1, 1]} : vector<16x16xf32> to vector<16x1xf32>
    %241 = vector.broadcast %240 : vector<16x1xf32> to vector<16x64xf32>
    %242 = arith.mulf %241, %239 : vector<16x64xf32>
    %cst_57 = arith.constant dense<0.000000e+00> : vector<64xf32>
    %243 = vector.multi_reduction <add>, %242, %cst_57 [0] : vector<16x64xf32> to vector<64xf32>
    %244 = vector.shape_cast %243 : vector<64xf32> to vector<1x64xf32>
    %c6 = arith.constant 6 : index
    %c0_58 = arith.constant 0 : index
    %245 = vector.load %arg8[%c6, %c0_58] : memref<16x64xf32, #tpu.memory_space<vmem>>, vector<1x64xf32>
    tpu.vector_store %arg8[%c6, %c0_58], %244 {strides = array<i32>} : memref<16x64xf32, #tpu.memory_space<vmem>>, vector<1x64xf32>,
    %c112 = arith.constant 112 : index
    %c0_59 = arith.constant 0 : index
    %246 = vector.load %arg7[%c112, %c0_59] : memref<256x64xf32, #tpu.memory_space<vmem>>, vector<16x64xf32>
    %247 = arith.mulf %246, %239 : vector<16x64xf32>
    %248 = vector.extract_strided_slice %145 {offsets = [0, 7], sizes = [16, 1], strides = [1, 1]} : vector<16x16xf32> to vector<16x1xf32>
    %249 = vector.extract_strided_slice %144 {offsets = [7, 0], sizes = [1, 64], strides = [1, 1]} : vector<16x64xf32> to vector<1x64xf32>
    %250 = vector.broadcast %248 : vector<16x1xf32> to vector<16x64xf32>
    %251 = vector.broadcast %249 : vector<1x64xf32> to vector<16x64xf32>
    %252 = arith.mulf %250, %251 : vector<16x64xf32>
    %253 = arith.addf %247, %252 : vector<16x64xf32>
    %254 = vector.extract_strided_slice %146 {offsets = [0, 7], sizes = [16, 1], strides = [1, 1]} : vector<16x16xf32> to vector<16x1xf32>
    %255 = vector.broadcast %254 : vector<16x1xf32> to vector<16x64xf32>
    %256 = arith.mulf %255, %253 : vector<16x64xf32>
    %cst_60 = arith.constant dense<0.000000e+00> : vector<64xf32>
    %257 = vector.multi_reduction <add>, %256, %cst_60 [0] : vector<16x64xf32> to vector<64xf32>
    %258 = vector.shape_cast %257 : vector<64xf32> to vector<1x64xf32>
    %c7 = arith.constant 7 : index
    %c0_61 = arith.constant 0 : index
    %259 = vector.load %arg8[%c7, %c0_61] : memref<16x64xf32, #tpu.memory_space<vmem>>, vector<1x64xf32>
    tpu.vector_store %arg8[%c7, %c0_61], %258 {strides = array<i32>} : memref<16x64xf32, #tpu.memory_space<vmem>>, vector<1x64xf32>,
    %cst_62 = arith.constant 0.000000e+00 : f32
    %260 = vector.broadcast %cst_62 : f32 to vector<16x64xf32>
    %c128 = arith.constant 128 : index
    %c0_63 = arith.constant 0 : index
    %261 = vector.load %arg7[%c128, %c0_63] : memref<256x64xf32, #tpu.memory_space<vmem>>, vector<16x64xf32>
    %262 = arith.mulf %261, %260 : vector<16x64xf32>
    %263 = vector.extract_strided_slice %145 {offsets = [0, 8], sizes = [16, 1], strides = [1, 1]} : vector<16x16xf32> to vector<16x1xf32>
    %264 = vector.extract_strided_slice %144 {offsets = [8, 0], sizes = [1, 64], strides = [1, 1]} : vector<16x64xf32> to vector<1x64xf32>
    %265 = vector.broadcast %263 : vector<16x1xf32> to vector<16x64xf32>
    %266 = vector.broadcast %264 : vector<1x64xf32> to vector<16x64xf32>
    %267 = arith.mulf %265, %266 : vector<16x64xf32>
    %268 = arith.addf %262, %267 : vector<16x64xf32>
    %269 = vector.extract_strided_slice %146 {offsets = [0, 8], sizes = [16, 1], strides = [1, 1]} : vector<16x16xf32> to vector<16x1xf32>
    %270 = vector.broadcast %269 : vector<16x1xf32> to vector<16x64xf32>
    %271 = arith.mulf %270, %268 : vector<16x64xf32>
    %cst_64 = arith.constant dense<0.000000e+00> : vector<64xf32>
    %272 = vector.multi_reduction <add>, %271, %cst_64 [0] : vector<16x64xf32> to vector<64xf32>
    %273 = vector.shape_cast %272 : vector<64xf32> to vector<1x64xf32>
    %c8 = arith.constant 8 : index
    %c0_65 = arith.constant 0 : index
    %274 = vector.load %arg8[%c8, %c0_65] : memref<16x64xf32, #tpu.memory_space<vmem>>, vector<1x64xf32>
    tpu.vector_store %arg8[%c8, %c0_65], %273 {strides = array<i32>} : memref<16x64xf32, #tpu.memory_space<vmem>>, vector<1x64xf32>,
    %c144 = arith.constant 144 : index
    %c0_66 = arith.constant 0 : index
    %275 = vector.load %arg7[%c144, %c0_66] : memref<256x64xf32, #tpu.memory_space<vmem>>, vector<16x64xf32>
    %276 = arith.mulf %275, %268 : vector<16x64xf32>
    %277 = vector.extract_strided_slice %145 {offsets = [0, 9], sizes = [16, 1], strides = [1, 1]} : vector<16x16xf32> to vector<16x1xf32>
    %278 = vector.extract_strided_slice %144 {offsets = [9, 0], sizes = [1, 64], strides = [1, 1]} : vector<16x64xf32> to vector<1x64xf32>
    %279 = vector.broadcast %277 : vector<16x1xf32> to vector<16x64xf32>
    %280 = vector.broadcast %278 : vector<1x64xf32> to vector<16x64xf32>
    %281 = arith.mulf %279, %280 : vector<16x64xf32>
    %282 = arith.addf %276, %281 : vector<16x64xf32>
    %283 = vector.extract_strided_slice %146 {offsets = [0, 9], sizes = [16, 1], strides = [1, 1]} : vector<16x16xf32> to vector<16x1xf32>
    %284 = vector.broadcast %283 : vector<16x1xf32> to vector<16x64xf32>
    %285 = arith.mulf %284, %282 : vector<16x64xf32>
    %cst_67 = arith.constant dense<0.000000e+00> : vector<64xf32>
    %286 = vector.multi_reduction <add>, %285, %cst_67 [0] : vector<16x64xf32> to vector<64xf32>
    %287 = vector.shape_cast %286 : vector<64xf32> to vector<1x64xf32>
    %c9 = arith.constant 9 : index
    %c0_68 = arith.constant 0 : index
    %288 = vector.load %arg8[%c9, %c0_68] : memref<16x64xf32, #tpu.memory_space<vmem>>, vector<1x64xf32>
    tpu.vector_store %arg8[%c9, %c0_68], %287 {strides = array<i32>} : memref<16x64xf32, #tpu.memory_space<vmem>>, vector<1x64xf32>,
    %c160 = arith.constant 160 : index
    %c0_69 = arith.constant 0 : index
    %289 = vector.load %arg7[%c160, %c0_69] : memref<256x64xf32, #tpu.memory_space<vmem>>, vector<16x64xf32>
    %290 = arith.mulf %289, %282 : vector<16x64xf32>
    %291 = vector.extract_strided_slice %145 {offsets = [0, 10], sizes = [16, 1], strides = [1, 1]} : vector<16x16xf32> to vector<16x1xf32>
    %292 = vector.extract_strided_slice %144 {offsets = [10, 0], sizes = [1, 64], strides = [1, 1]} : vector<16x64xf32> to vector<1x64xf32>
    %293 = vector.broadcast %291 : vector<16x1xf32> to vector<16x64xf32>
    %294 = vector.broadcast %292 : vector<1x64xf32> to vector<16x64xf32>
    %295 = arith.mulf %293, %294 : vector<16x64xf32>
    %296 = arith.addf %290, %295 : vector<16x64xf32>
    %297 = vector.extract_strided_slice %146 {offsets = [0, 10], sizes = [16, 1], strides = [1, 1]} : vector<16x16xf32> to vector<16x1xf32>
    %298 = vector.broadcast %297 : vector<16x1xf32> to vector<16x64xf32>
    %299 = arith.mulf %298, %296 : vector<16x64xf32>
    %cst_70 = arith.constant dense<0.000000e+00> : vector<64xf32>
    %300 = vector.multi_reduction <add>, %299, %cst_70 [0] : vector<16x64xf32> to vector<64xf32>
    %301 = vector.shape_cast %300 : vector<64xf32> to vector<1x64xf32>
    %c10 = arith.constant 10 : index
    %c0_71 = arith.constant 0 : index
    %302 = vector.load %arg8[%c10, %c0_71] : memref<16x64xf32, #tpu.memory_space<vmem>>, vector<1x64xf32>
    tpu.vector_store %arg8[%c10, %c0_71], %301 {strides = array<i32>} : memref<16x64xf32, #tpu.memory_space<vmem>>, vector<1x64xf32>,
    %c176 = arith.constant 176 : index
    %c0_72 = arith.constant 0 : index
    %303 = vector.load %arg7[%c176, %c0_72] : memref<256x64xf32, #tpu.memory_space<vmem>>, vector<16x64xf32>
    %304 = arith.mulf %303, %296 : vector<16x64xf32>
    %305 = vector.extract_strided_slice %145 {offsets = [0, 11], sizes = [16, 1], strides = [1, 1]} : vector<16x16xf32> to vector<16x1xf32>
    %306 = vector.extract_strided_slice %144 {offsets = [11, 0], sizes = [1, 64], strides = [1, 1]} : vector<16x64xf32> to vector<1x64xf32>
    %307 = vector.broadcast %305 : vector<16x1xf32> to vector<16x64xf32>
    %308 = vector.broadcast %306 : vector<1x64xf32> to vector<16x64xf32>
    %309 = arith.mulf %307, %308 : vector<16x64xf32>
    %310 = arith.addf %304, %309 : vector<16x64xf32>
    %311 = vector.extract_strided_slice %146 {offsets = [0, 11], sizes = [16, 1], strides = [1, 1]} : vector<16x16xf32> to vector<16x1xf32>
    %312 = vector.broadcast %311 : vector<16x1xf32> to vector<16x64xf32>
    %313 = arith.mulf %312, %310 : vector<16x64xf32>
    %cst_73 = arith.constant dense<0.000000e+00> : vector<64xf32>
    %314 = vector.multi_reduction <add>, %313, %cst_73 [0] : vector<16x64xf32> to vector<64xf32>
    %315 = vector.shape_cast %314 : vector<64xf32> to vector<1x64xf32>
    %c11 = arith.constant 11 : index
    %c0_74 = arith.constant 0 : index
    %316 = vector.load %arg8[%c11, %c0_74] : memref<16x64xf32, #tpu.memory_space<vmem>>, vector<1x64xf32>
    tpu.vector_store %arg8[%c11, %c0_74], %315 {strides = array<i32>} : memref<16x64xf32, #tpu.memory_space<vmem>>, vector<1x64xf32>,
    %c192 = arith.constant 192 : index
    %c0_75 = arith.constant 0 : index
    %317 = vector.load %arg7[%c192, %c0_75] : memref<256x64xf32, #tpu.memory_space<vmem>>, vector<16x64xf32>
    %318 = arith.mulf %317, %310 : vector<16x64xf32>
    %319 = vector.extract_strided_slice %145 {offsets = [0, 12], sizes = [16, 1], strides = [1, 1]} : vector<16x16xf32> to vector<16x1xf32>
    %320 = vector.extract_strided_slice %144 {offsets = [12, 0], sizes = [1, 64], strides = [1, 1]} : vector<16x64xf32> to vector<1x64xf32>
    %321 = vector.broadcast %319 : vector<16x1xf32> to vector<16x64xf32>
    %322 = vector.broadcast %320 : vector<1x64xf32> to vector<16x64xf32>
    %323 = arith.mulf %321, %322 : vector<16x64xf32>
    %324 = arith.addf %318, %323 : vector<16x64xf32>
    %325 = vector.extract_strided_slice %146 {offsets = [0, 12], sizes = [16, 1], strides = [1, 1]} : vector<16x16xf32> to vector<16x1xf32>
    %326 = vector.broadcast %325 : vector<16x1xf32> to vector<16x64xf32>
    %327 = arith.mulf %326, %324 : vector<16x64xf32>
    %cst_76 = arith.constant dense<0.000000e+00> : vector<64xf32>
    %328 = vector.multi_reduction <add>, %327, %cst_76 [0] : vector<16x64xf32> to vector<64xf32>
    %329 = vector.shape_cast %328 : vector<64xf32> to vector<1x64xf32>
    %c12 = arith.constant 12 : index
    %c0_77 = arith.constant 0 : index
    %330 = vector.load %arg8[%c12, %c0_77] : memref<16x64xf32, #tpu.memory_space<vmem>>, vector<1x64xf32>
    tpu.vector_store %arg8[%c12, %c0_77], %329 {strides = array<i32>} : memref<16x64xf32, #tpu.memory_space<vmem>>, vector<1x64xf32>,
    %c208 = arith.constant 208 : index
    %c0_78 = arith.constant 0 : index
    %331 = vector.load %arg7[%c208, %c0_78] : memref<256x64xf32, #tpu.memory_space<vmem>>, vector<16x64xf32>
    %332 = arith.mulf %331, %324 : vector<16x64xf32>
    %333 = vector.extract_strided_slice %145 {offsets = [0, 13], sizes = [16, 1], strides = [1, 1]} : vector<16x16xf32> to vector<16x1xf32>
    %334 = vector.extract_strided_slice %144 {offsets = [13, 0], sizes = [1, 64], strides = [1, 1]} : vector<16x64xf32> to vector<1x64xf32>
    %335 = vector.broadcast %333 : vector<16x1xf32> to vector<16x64xf32>
    %336 = vector.broadcast %334 : vector<1x64xf32> to vector<16x64xf32>
    %337 = arith.mulf %335, %336 : vector<16x64xf32>
    %338 = arith.addf %332, %337 : vector<16x64xf32>
    %339 = vector.extract_strided_slice %146 {offsets = [0, 13], sizes = [16, 1], strides = [1, 1]} : vector<16x16xf32> to vector<16x1xf32>
    %340 = vector.broadcast %339 : vector<16x1xf32> to vector<16x64xf32>
    %341 = arith.mulf %340, %338 : vector<16x64xf32>
    %cst_79 = arith.constant dense<0.000000e+00> : vector<64xf32>
    %342 = vector.multi_reduction <add>, %341, %cst_79 [0] : vector<16x64xf32> to vector<64xf32>
    %343 = vector.shape_cast %342 : vector<64xf32> to vector<1x64xf32>
    %c13 = arith.constant 13 : index
    %c0_80 = arith.constant 0 : index
    %344 = vector.load %arg8[%c13, %c0_80] : memref<16x64xf32, #tpu.memory_space<vmem>>, vector<1x64xf32>
    tpu.vector_store %arg8[%c13, %c0_80], %343 {strides = array<i32>} : memref<16x64xf32, #tpu.memory_space<vmem>>, vector<1x64xf32>,
    %c224 = arith.constant 224 : index
    %c0_81 = arith.constant 0 : index
    %345 = vector.load %arg7[%c224, %c0_81] : memref<256x64xf32, #tpu.memory_space<vmem>>, vector<16x64xf32>
    %346 = arith.mulf %345, %338 : vector<16x64xf32>
    %347 = vector.extract_strided_slice %145 {offsets = [0, 14], sizes = [16, 1], strides = [1, 1]} : vector<16x16xf32> to vector<16x1xf32>
    %348 = vector.extract_strided_slice %144 {offsets = [14, 0], sizes = [1, 64], strides = [1, 1]} : vector<16x64xf32> to vector<1x64xf32>
    %349 = vector.broadcast %347 : vector<16x1xf32> to vector<16x64xf32>
    %350 = vector.broadcast %348 : vector<1x64xf32> to vector<16x64xf32>
    %351 = arith.mulf %349, %350 : vector<16x64xf32>
    %352 = arith.addf %346, %351 : vector<16x64xf32>
    %353 = vector.extract_strided_slice %146 {offsets = [0, 14], sizes = [16, 1], strides = [1, 1]} : vector<16x16xf32> to vector<16x1xf32>
    %354 = vector.broadcast %353 : vector<16x1xf32> to vector<16x64xf32>
    %355 = arith.mulf %354, %352 : vector<16x64xf32>
    %cst_82 = arith.constant dense<0.000000e+00> : vector<64xf32>
    %356 = vector.multi_reduction <add>, %355, %cst_82 [0] : vector<16x64xf32> to vector<64xf32>
    %357 = vector.shape_cast %356 : vector<64xf32> to vector<1x64xf32>
    %c14 = arith.constant 14 : index
    %c0_83 = arith.constant 0 : index
    %358 = vector.load %arg8[%c14, %c0_83] : memref<16x64xf32, #tpu.memory_space<vmem>>, vector<1x64xf32>
    tpu.vector_store %arg8[%c14, %c0_83], %357 {strides = array<i32>} : memref<16x64xf32, #tpu.memory_space<vmem>>, vector<1x64xf32>,
    %c240 = arith.constant 240 : index
    %c0_84 = arith.constant 0 : index
    %359 = vector.load %arg7[%c240, %c0_84] : memref<256x64xf32, #tpu.memory_space<vmem>>, vector<16x64xf32>
    %360 = arith.mulf %359, %352 : vector<16x64xf32>
    %361 = vector.extract_strided_slice %145 {offsets = [0, 15], sizes = [16, 1], strides = [1, 1]} : vector<16x16xf32> to vector<16x1xf32>
    %362 = vector.extract_strided_slice %144 {offsets = [15, 0], sizes = [1, 64], strides = [1, 1]} : vector<16x64xf32> to vector<1x64xf32>
    %363 = vector.broadcast %361 : vector<16x1xf32> to vector<16x64xf32>
    %364 = vector.broadcast %362 : vector<1x64xf32> to vector<16x64xf32>
    %365 = arith.mulf %363, %364 : vector<16x64xf32>
    %366 = arith.addf %360, %365 : vector<16x64xf32>
    %367 = vector.extract_strided_slice %146 {offsets = [0, 15], sizes = [16, 1], strides = [1, 1]} : vector<16x16xf32> to vector<16x1xf32>
    %368 = vector.broadcast %367 : vector<16x1xf32> to vector<16x64xf32>
    %369 = arith.mulf %368, %366 : vector<16x64xf32>
    %cst_85 = arith.constant dense<0.000000e+00> : vector<64xf32>
    %370 = vector.multi_reduction <add>, %369, %cst_85 [0] : vector<16x64xf32> to vector<64xf32>
    %371 = vector.shape_cast %370 : vector<64xf32> to vector<1x64xf32>
    %c15 = arith.constant 15 : index
    %c0_86 = arith.constant 0 : index
    %372 = vector.load %arg8[%c15, %c0_86] : memref<16x64xf32, #tpu.memory_space<vmem>>, vector<1x64xf32>
    tpu.vector_store %arg8[%c15, %c0_86], %371 {strides = array<i32>} : memref<16x64xf32, #tpu.memory_space<vmem>>, vector<1x64xf32>,
    %c0_87 = arith.constant 0 : index
    %c0_88 = arith.constant 0 : index
    %373 = vector.load %arg8[%c0_87, %c0_88] : memref<16x64xf32, #tpu.memory_space<vmem>>, vector<16x64xf32>
    %374 = vector.broadcast %90 : vector<1x64xf32> to vector<16x64xf32>
    %375 = arith.mulf %374, %68 : vector<16x64xf32>
    %376 = arith.addf %373, %375 : vector<16x64xf32>
    %cst_89 = arith.constant 0.000000e+00 : f32
    %377 = vector.broadcast %cst_89 : f32 to vector<16x64xf32>
    %378 = arith.subf %377, %4 : vector<16x64xf32>
    %379 = math.exp %378 : vector<16x64xf32>
    %cst_90 = arith.constant 1.000000e+00 : f32
    %380 = vector.broadcast %cst_90 : f32 to vector<16x64xf32>
    %381 = arith.addf %380, %379 : vector<16x64xf32>
    %382 = tpu.reciprocal %381 {approx = true} : vector<16x64xf32> -> vector<16x64xf32>
    %383 = arith.mulf %4, %382 : vector<16x64xf32>
    %384 = arith.mulf %376, %383 : vector<16x64xf32>
    %c0_91 = arith.constant 0 : index
    %c0_92 = arith.constant 0 : index
    %385 = vector.load %arg5[%c0_91, %c0_92] : memref<64x128xf32, #tpu.memory_space<vmem>>, vector<64x128xf32>
    %cst_93 = arith.constant dense<0.000000e+00> : vector<16x128xf32>
    %386 = tpu.matmul %384, %385, %cst_93 {dimension_numbers = #tpu.dot_dimension_numbers<[1], [0], [0], [1], [0, 0, 1, 1], [], []>} : vector<16x64xf32>, vector<64x128xf32>, vector<16x128xf32> -> vector<16x128xf32>
    %c0_94 = arith.constant 0 : index
    %c0_95 = arith.constant 0 : index
    %387 = vector.load %arg6[%c0_94, %c0_95] : memref<16x128xf32, #tpu.memory_space<vmem>>, vector<16x128xf32>
    tpu.vector_store %arg6[%c0_94, %c0_95], %386 {strides = array<i32>} : memref<16x128xf32, #tpu.memory_space<vmem>>, vector<16x128xf32>,
    return
  }
}

</mosaic_0001>

<llo_original>
// kernel: tpu_custom_call.1
$region0: #{tpu_custom_call.1}
  #allocation0 [shape = 'u32[]', space=smem, size = 0x4, offset = 0x4, fixed_abs, tag = 'smem constant byte address 0x4 - core index']
  #allocation1 [shape = 'u32[72,128]{1,0:T(1,128)}', space=vmem, size = 0x9000, scoped, tag = 'internal scratch']
  #allocation2 [shape = 'f32[256,64]{1,0:T(8,128)}', space=vmem, size = 0x20000, scoped, tag = 'scratch operand']
  #allocation3 [shape = 'f32[16,64]{1,0:T(8,128)}', space=vmem, size = 0x2000, scoped, tag = 'scratch operand']
  %s0 = inlined_call_operand.hbm [shape: f32[16,32], index: 0, kind: input, shape index: {}]
  %s1 = inlined_call_operand.hbm [shape: f32[32,128], index: 1, kind: input, shape index: {}]
  %s2 = inlined_call_operand.hbm [shape: f32[4,64], index: 2, kind: input, shape index: {}]
  %s3 = inlined_call_operand.hbm [shape: f32[64,96], index: 3, kind: input, shape index: {}]
  %s4 = inlined_call_operand.hbm [shape: f32[19,64], index: 4, kind: input, shape index: {}]
  %s5 = inlined_call_operand.hbm [shape: f32[64,128], index: 5, kind: input, shape index: {}]
  %s6 = inlined_call_operand.hbm [shape: f32[16,128], index: 6, kind: output, shape index: {}]
  %s7 = sld [smem:[#allocation0]]
  $region58: #{tpu_custom_call.1} parent=0
    _
  %s9 = ssub.s32 1, %s7
  %s10 = scalar_select 0, %s9, %s7
  $region1: #{tpu_custom_call.1} parent=0
    #allocation4 [shape = 'u8[8192]{0}', space=vmem, size = 0x2000, scoped, tag = 'input window, operand 0, single buffered']
    #allocation5 [shape = 's32[1]{0}', space=sflag, size = 0x4, scoped, tag = 'scoped memory for tpu_custom_call.1']
    #allocation6 [shape = 's32[1]{0}', space=sflag, size = 0x4, scoped, tag = 'scoped memory for tpu_custom_call.1']
    #allocation7 [shape = 'u8[16384]{0}', space=vmem, size = 0x4000, scoped, tag = 'input window, operand 1, single buffered']
    #allocation8 [shape = 's32[1]{0}', space=sflag, size = 0x4, scoped, tag = 'scoped memory for tpu_custom_call.1']
    #allocation9 [shape = 'u8[2048]{0}', space=vmem, size = 0x800, scoped, tag = 'input window, operand 2, single buffered']
    #allocation10 [shape = 'u8[32768]{0}', space=vmem, size = 0x8000, scoped, tag = 'input window, operand 3, single buffered']
    #allocation11 [shape = 's32[1]{0}', space=sflag, size = 0x4, scoped, tag = 'scoped memory for tpu_custom_call.1']
    #allocation12 [shape = 'u8[12288]{0}', space=vmem, size = 0x3000, scoped, tag = 'input window, operand 4, single buffered']
    #allocation13 [shape = 'u8[32768]{0}', space=vmem, size = 0x8000, scoped, tag = 'input window, operand 5, single buffered']
    #allocation14 [shape = 's32[1]{0}', space=sflag, size = 0x4, scoped, tag = 'scoped memory for tpu_custom_call.1']
    #allocation15 [shape = 'u8[8192]{0}', space=vmem, size = 0x2000, scoped, tag = 'output window, operand 0, single buffered']
    %11 = vsyncpa [#allocation5], 0
    %12 = vsyncpa [#allocation8], 0
    %13 = vsyncpa [#allocation11], 0
    %14 = vsyncpa [#allocation14], 0
    %15 = vsyncpa [#allocation6], 0
    // Predicated region
    $region2: #{tpu_custom_call.1} parent=1 // pred_check
      _
    $region3: #{tpu_custom_call.1} parent=1 // pred_check_branch
      %17 = sbr.rel (0) target = $region5
    $region4: #{tpu_custom_call.1} parent=1 // pred_region
      %19 = vsyncadd [#allocation5], 0
      %s20 = sshll.u32 %s0, 4
      %s21 = int_to_ptr.hbm [resolvable:$true] %s20
      %s22 = sshll.u32 [#allocation4], 4
      %s23 = int_to_ptr.vmem [resolvable:$true] %s22
      %28 = dma.hbm_to_vmem [thread:$0]  %s21, 256, %s23, [#allocation5], 128, 128, 8
    $region5: #{tpu_custom_call.1} parent=1 // pred_fallthru
      _
    // Predicated region
    $region6: #{tpu_custom_call.1} parent=1 // pred_check
      _
    $region7: #{tpu_custom_call.1} parent=1 // pred_check_branch
      %30 = sbr.rel (0) target = $region9
    $region8: #{tpu_custom_call.1} parent=1 // pred_region
      %32 = vsyncadd [#allocation8], 0
      %s33 = sshll.u32 %s1, 4
      %s34 = int_to_ptr.hbm [resolvable:$true] %s33
      %s35 = sshll.u32 [#allocation7], 4
      %s36 = int_to_ptr.vmem [resolvable:$true] %s35
      %41 = dma.hbm_to_vmem [thread:$0]  %s34, 512, %s36, [#allocation8], 128, 128, 8
    $region9: #{tpu_custom_call.1} parent=1 // pred_fallthru
      _
    // Predicated region
    $region10: #{tpu_custom_call.1} parent=1 // pred_check
      _
    $region11: #{tpu_custom_call.1} parent=1 // pred_check_branch
      %43 = sbr.rel (0) target = $region13
    $region12: #{tpu_custom_call.1} parent=1 // pred_region
      %45 = vsyncadd [#allocation8], 0
      %s47 = sshll.u32 %s2, 4
      %s48 = int_to_ptr.hbm [resolvable:$true] %s47
      %s49 = sshll.u32 [#allocation9], 4
      %s50 = int_to_ptr.vmem [resolvable:$true] %s49
      %52 = dma.hbm_to_vmem [thread:$0]  %s48, 64, %s50, [#allocation8]
    $region13: #{tpu_custom_call.1} parent=1 // pred_fallthru
      _
    // Predicated region
    $region14: #{tpu_custom_call.1} parent=1 // pred_check
      _
    $region15: #{tpu_custom_call.1} parent=1 // pred_check_branch
      %54 = sbr.rel (0) target = $region17
    $region16: #{tpu_custom_call.1} parent=1 // pred_region
      %56 = vsyncadd [#allocation11], 0
      %s57 = sshll.u32 %s3, 4
      %s58 = int_to_ptr.hbm [resolvable:$true] %s57
      %s59 = sshll.u32 [#allocation10], 4
      %s60 = int_to_ptr.vmem [resolvable:$true] %s59
      %65 = dma.hbm_to_vmem [thread:$0]  %s58, 1024, %s60, [#allocation11], 128, 128, 8
    $region17: #{tpu_custom_call.1} parent=1 // pred_fallthru
      _
    // Predicated region
    $region18: #{tpu_custom_call.1} parent=1 // pred_check
      _
    $region19: #{tpu_custom_call.1} parent=1 // pred_check_branch
      %67 = sbr.rel (0) target = $region21
    $region20: #{tpu_custom_call.1} parent=1 // pred_region
      %69 = vsyncadd [#allocation11], 0
      %s70 = sshll.u32 %s4, 4
      %s71 = int_to_ptr.hbm [resolvable:$true] %s70
      %s72 = sshll.u32 [#allocation12], 4
      %s73 = int_to_ptr.vmem [resolvable:$true] %s72
      %78 = dma.hbm_to_vmem [thread:$0]  %s71, 384, %s73, [#allocation11], 128, 128, 8
    $region21: #{tpu_custom_call.1} parent=1 // pred_fallthru
      _
    // Predicated region
    $region22: #{tpu_custom_call.1} parent=1 // pred_check
      _
    $region23: #{tpu_custom_call.1} parent=1 // pred_check_branch
      %80 = sbr.rel (0) target = $region25
    $region24: #{tpu_custom_call.1} parent=1 // pred_region
      %82 = vsyncadd [#allocation14], 0
      %s83 = sshll.u32 %s5, 4
      %s84 = int_to_ptr.hbm [resolvable:$true] %s83
      %s85 = sshll.u32 [#allocation13], 4
      %s86 = int_to_ptr.vmem [resolvable:$true] %s85
      %91 = dma.hbm_to_vmem [thread:$0]  %s84, 1024, %s86, [#allocation14], 128, 128, 8
    $region25: #{tpu_custom_call.1} parent=1 // pred_fallthru
      _
    // Predicated region
    $region26: #{tpu_custom_call.1} parent=1 // pred_check
      _
    $region27: #{tpu_custom_call.1} parent=1 // pred_check_branch
      %93 = sbr.rel (0) target = $region29
    $region28: #{tpu_custom_call.1} parent=1 // pred_region
      %95 = dma.done [#allocation5], 256
    $region29: #{tpu_custom_call.1} parent=1 // pred_fallthru
      _
    // Predicated region
    $region30: #{tpu_custom_call.1} parent=1 // pred_check
      _
    $region31: #{tpu_custom_call.1} parent=1 // pred_check_branch
      %97 = sbr.rel (0) target = $region33
    $region32: #{tpu_custom_call.1} parent=1 // pred_region
      %99 = dma.done [#allocation8], 512
    $region33: #{tpu_custom_call.1} parent=1 // pred_fallthru
      _
    // Predicated region
    $region34: #{tpu_custom_call.1} parent=1 // pred_check
      _
    $region35: #{tpu_custom_call.1} parent=1 // pred_check_branch
      %101 = sbr.rel (0) target = $region37
    $region36: #{tpu_custom_call.1} parent=1 // pred_region
      %103 = dma.done [#allocation8], 64
    $region37: #{tpu_custom_call.1} parent=1 // pred_fallthru
      _
    // Predicated region
    $region38: #{tpu_custom_call.1} parent=1 // pred_check
      _
    $region39: #{tpu_custom_call.1} parent=1 // pred_check_branch
      %105 = sbr.rel (0) target = $region41
    $region40: #{tpu_custom_call.1} parent=1 // pred_region
      %107 = dma.done [#allocation11], 1024
    $region41: #{tpu_custom_call.1} parent=1 // pred_fallthru
      _
    // Predicated region
    $region42: #{tpu_custom_call.1} parent=1 // pred_check
      _
    $region43: #{tpu_custom_call.1} parent=1 // pred_check_branch
      %109 = sbr.rel (0) target = $region45
    $region44: #{tpu_custom_call.1} parent=1 // pred_region
      %111 = dma.done [#allocation11], 384
    $region45: #{tpu_custom_call.1} parent=1 // pred_fallthru
      _
    // Predicated region
    $region46: #{tpu_custom_call.1} parent=1 // pred_check
      _
    $region47: #{tpu_custom_call.1} parent=1 // pred_check_branch
      %113 = sbr.rel (0) target = $region49
    $region48: #{tpu_custom_call.1} parent=1 // pred_region
      %115 = dma.done [#allocation14], 1024
    $region49: #{tpu_custom_call.1} parent=1 // pred_fallthru
      _
    %v116 = vld [vmem:[#allocation4] sm:$0xff]
    %v117 = vld [vmem:[#allocation4 + $0x8] sm:$0xff]
    %v118 = vld [vmem:[#allocation7] sm:$0xff]
    %v119 = vld [vmem:[#allocation7 + $0x8] sm:$0xff]
    %v120 = vld [vmem:[#allocation7 + $0x10] sm:$0xff]
    %v121 = vld [vmem:[#allocation7 + $0x18] sm:$0xff]
    %vm122 = vcmask 261120
    %v124 = vsel %vm122, %v116, 0
    %v127 = vsel %vm122, %v117, 0
    %129 = vmatpush.msra.mxu0 0.0
    %130 = vmatpush.msra.mxu0 0.0
    %131 = vmatpush.msra.mxu0 0.0
    %132 = vmatpush.msra.mxu0 0.0
    %133 = vmatpush.msra.mxu0 0.0
    %134 = vmatpush.msra.mxu0 0.0
    %135 = vmatpush.msra.mxu0 0.0
    %136 = vmatpush.msra.mxu0 0.0
    %137 = vmatpush.msra.mxu0 0.0
    %138 = vmatpush.msra.mxu0 0.0
    %139 = vmatpush.msra.mxu0 0.0
    %140 = vmatpush.msra.mxu0 0.0
    %141 = vmatpush.msra.mxu0 %v121
    %142 = vmatpush.msra.mxu0 %v120
    %143 = vmatpush.msra.mxu0 %v119
    %144 = vmatpush.msra.mxu0 %v118
    %145 = vmatmul.f32.gmra.mxu0 %v124
    %v146 = vpop.f32.mrf.mxu0
    %v147 = vadd.f32 0.0, %v146
    %148 = vmatmul.f32.gmra.mxu0 %v127
    %v149 = vpop.f32.mrf.mxu0
    %v150 = vadd.f32 0.0, %v149
    %151 = vdwg.mxu0
    %v152 = vld [vmem:[#allocation9] sm:$0xf]
    %v153 = vld [vmem:[#allocation12 + $0x10] sm:$0x1]
    %v154 = vlaneseq
    %v155 = vshrl.u32 %v154, 7
    %v156 = vadd.s32 %v155, 8
    %vm157 = vcmp.lt.s32.totalorder %v155, 0
    %v158 = vsub.s32 0, %v155
    %v159 = vsel %vm157, %v158, %v155
    %v160 = vshrl.u32 %v159, 3
    %v161 = vand.u32 %v159, 7
    %v162 = vsub.s32 0, %v161
    %v163 = vsel %vm157, %v162, %v161
    %vm164 = vcmp.lt.s32.totalorder %v156, 0
    %v165 = vsub.s32 0, %v156
    %v166 = vsel %vm164, %v165, %v156
    %v167 = vshrl.u32 %v166, 3
    %v168 = vand.u32 %v166, 7
    %v169 = vsub.s32 0, %v168
    %v170 = vsel %vm164, %v169, %v168
    %vm171 = vcmp.ne.s32.totalorder %v163, 0
    %vm172 = vcmp.ne.s32.totalorder %v170, 0
    %vm173 = vcmp.lt.s32.totalorder %v163, 0
    %vm174 = vcmp.lt.s32.totalorder %v170, 0
    %vm175 = vmand %vm173, %vm171
    %vm176 = vmand %vm174, %vm172
    %v177 = vadd.s32 %v163, 8
    %v178 = vadd.s32 %v170, 8
    %v179 = vsel %vm175, %v177, %v163
    %v180 = vsel %vm176, %v178, %v170
    %v181 = vperm.slane %v153, 0
    %v182 = vadd.f32 %v181, 0.0
    %vm183 = vcmp.ge.s32.totalorder %v179, 0
    %vm184 = vcmp.ge.s32.totalorder %v180, 0
    %v185 = vsel %vm183, %v147, 0.0
    %v186 = vsel %vm184, %v150, 0.0
    %v187 = vperm.slane %v152, 3
    %v188 = vmul.f32 %v187, %v185
    %v189 = vmul.f32 %v187, %v186
    %v190 = vadd.f32 %v182, %v188
    %v191 = vadd.f32 %v182, %v189
    %v192 = vrot.slane %v147, 7
    %v193 = vrot.slane %v150, 7
    %vm194 = vcmp.lt.s32.totalorder %v155, 1
    %v195 = vsel %vm194, %v192, %v193
    %v196 = vsel %vm194, %v193, %v192
    %vm197 = vcmp.ge.s32.totalorder %v179, 1
    %vm198 = vcmp.ge.s32.totalorder %v180, 1
    %v199 = vsel %vm197, %v196, 0.0
    %v200 = vsel %vm198, %v195, 0.0
    %v201 = vperm.slane %v152, 2
    %v202 = vmul.f32 %v201, %v199
    %v203 = vmul.f32 %v201, %v200
    %v204 = vadd.f32 %v190, %v202
    %v205 = vadd.f32 %v191, %v203
    %v206 = vrot.slane %v147, 6
    %v207 = vrot.slane %v150, 6
    %vm208 = vcmp.lt.s32.totalorder %v155, 2
    %v209 = vsel %vm208, %v206, %v207
    %v210 = vsel %vm208, %v207, %v206
    %vm211 = vcmp.ge.s32.totalorder %v179, 2
    %vm212 = vcmp.ge.s32.totalorder %v180, 2
    %v213 = vsel %vm211, %v210, 0.0
    %v214 = vsel %vm212, %v209, 0.0
    %v215 = vperm.slane %v152, 1
    %v216 = vmul.f32 %v215, %v213
    %v217 = vmul.f32 %v215, %v214
    %v218 = vadd.f32 %v204, %v216
    %v219 = vadd.f32 %v205, %v217
    %v220 = vrot.slane %v147, 5
    %v221 = vrot.slane %v150, 5
    %vm222 = vcmp.lt.s32.totalorder %v155, 3
    %v223 = vsel %vm222, %v220, %v221
    %v224 = vsel %vm222, %v221, %v220
    %vm225 = vcmp.ge.s32.totalorder %v179, 3
    %vm226 = vcmp.ge.s32.totalorder %v180, 3
    %v227 = vsel %vm225, %v224, 0.0
    %v228 = vsel %vm226, %v223, 0.0
    %v229 = vperm.slane %v152, 0
    %v230 = vmul.f32 %v229, %v227
    %v231 = vmul.f32 %v229, %v228
    %v232 = vadd.f32 %v218, %v230
    %v233 = vadd.f32 %v219, %v231
    %v234 = vsub.f32 0.0, %v232
    %v235 = vsub.f32 0.0, %v233
    %v236 = vmul.f32 %v234, 1.442695
    %v237 = vpow.pop %v236
    %v238 = vmul.f32 %v235, 1.442695
    %v239 = vpow.pop %v238
    %v240 = vadd.f32 %v237, 1.0
    %v241 = vadd.f32 %v239, 1.0
    %v242 = vrcp.pop %v240
    %v243 = vrcp.pop %v241
    %v244 = vmul.f32 %v232, %v242
    %v245 = vmul.f32 %v233, %v243
    %v246 = vld [vmem:[#allocation10] sm:$0xff]
    %v247 = vld [vmem:[#allocation10 + $0x8] sm:$0xff]
    %v248 = vld [vmem:[#allocation10 + $0x10] sm:$0xff]
    %v249 = vld [vmem:[#allocation10 + $0x18] sm:$0xff]
    %v250 = vld [vmem:[#allocation10 + $0x20] sm:$0xff]
    %v251 = vld [vmem:[#allocation10 + $0x28] sm:$0xff]
    %v252 = vld [vmem:[#allocation10 + $0x30] sm:$0xff]
    %v253 = vld [vmem:[#allocation10 + $0x38] sm:$0xff]
    %vm254 = vcmask 523264
    %v256 = vsel %vm254, %v244, 0
    %v259 = vsel %vm254, %v245, 0
    %261 = vmatpush.msra.mxu0 0.0
    %262 = vmatpush.msra.mxu0 0.0
    %263 = vmatpush.msra.mxu0 0.0
    %264 = vmatpush.msra.mxu0 0.0
    %265 = vmatpush.msra.mxu0 0.0
    %266 = vmatpush.msra.mxu0 0.0
    %267 = vmatpush.msra.mxu0 0.0
    %268 = vmatpush.msra.mxu0 0.0
    %269 = vmatpush.msra.mxu0 %v253
    %270 = vmatpush.msra.mxu0 %v252
    %271 = vmatpush.msra.mxu0 %v251
    %272 = vmatpush.msra.mxu0 %v250
    %273 = vmatpush.msra.mxu0 %v249
    %274 = vmatpush.msra.mxu0 %v248
    %275 = vmatpush.msra.mxu0 %v247
    %276 = vmatpush.msra.mxu0 %v246
    %277 = vmatmul.f32.gmra.mxu0 %v256
    %v278 = vpop.f32.mrf.mxu0
    %v279 = vadd.f32 0.0, %v278
    %280 = vmatmul.f32.gmra.mxu0 %v259
    %v281 = vpop.f32.mrf.mxu0
    %v282 = vadd.f32 0.0, %v281
    %283 = vdwg.mxu0
    %v284 = vld [vmem:[#allocation12 + $0x11] sm:$0x1]
    %v285 = vperm.slane %v284, 0
    %v286 = vadd.f32 %v279, %v285
    %v287 = vadd.f32 %v282, %v285
    %vm288 = vcmp.gt.f32.partialorder %v286, 20.0
    %vm289 = vcmp.gt.f32.partialorder %v287, 20.0
    %v290 = vmin.f32 %v286, 20.0
    %v291 = vmin.f32 %v287, 20.0
    %v292 = vmul.f32 %v290, 1.442695
    %v293 = vpow.pop %v292
    %v294 = vmul.f32 %v291, 1.442695
    %v295 = vpow.pop %v294
    %v296 = vadd.f32 %v293, 1.0
    %v297 = vadd.f32 %v295, 1.0
    %v298 = vlog2.pop %v296
    %v299 = vmul.f32 %v298, 0.6931472
    %v300 = vlog2.pop %v297
    %v301 = vmul.f32 %v300, 0.6931472
    %v302 = vsel %vm288, %v286, %v299
    %v303 = vsel %vm289, %v287, %v301
    %v304 = vld [vmem:[#allocation12] sm:$0xff]
    %v305 = vld [vmem:[#allocation12 + $0x8] sm:$0xff]
    %v306 = vmul.f32 %v304, 1.442695
    %v307 = vpow.pop %v306
    %v308 = vmul.f32 %v305, 1.442695
    %v309 = vpow.pop %v308
    %v310 = vsub.f32 0.0, %v307
    %v311 = vsub.f32 0.0, %v309
    %v312 = vld [vmem:[#allocation12 + $0x12] sm:$0x1]
    %v313 = vperm.slane %v302, 0
    %v314 = vperm.slane %v302, 1
    %v315 = vperm.slane %v302, 2
    %v316 = vperm.slane %v302, 3
    %v317 = vperm.slane %v302, 4
    %v318 = vperm.slane %v302, 5
    %v319 = vperm.slane %v302, 6
    %v320 = vperm.slane %v302, 7
    %v321 = vperm.slane %v303, 0
    %v322 = vperm.slane %v303, 1
    %v323 = vperm.slane %v303, 2
    %v324 = vperm.slane %v303, 3
    %v325 = vperm.slane %v303, 4
    %v326 = vperm.slane %v303, 5
    %v327 = vperm.slane %v303, 6
    %v328 = vperm.slane %v303, 7
    %v329 = vmul.f32 %v313, %v310
    %v330 = vmul.f32 %v313, %v311
    %v331 = vmul.f32 %v314, %v310
    %v332 = vmul.f32 %v314, %v311
    %v333 = vmul.f32 %v315, %v310
    %v334 = vmul.f32 %v315, %v311
    %v335 = vmul.f32 %v316, %v310
    %v336 = vmul.f32 %v316, %v311
    %v337 = vmul.f32 %v317, %v310
    %v338 = vmul.f32 %v317, %v311
    %v339 = vmul.f32 %v318, %v310
    %v340 = vmul.f32 %v318, %v311
    %v341 = vmul.f32 %v319, %v310
    %v342 = vmul.f32 %v319, %v311
    %v343 = vmul.f32 %v320, %v310
    %v344 = vmul.f32 %v320, %v311
    %v345 = vmul.f32 %v321, %v310
    %v346 = vmul.f32 %v321, %v311
    %v347 = vmul.f32 %v322, %v310
    %v348 = vmul.f32 %v322, %v311
    %v349 = vmul.f32 %v323, %v310
    %v350 = vmul.f32 %v323, %v311
    %v351 = vmul.f32 %v324, %v310
    %v352 = vmul.f32 %v324, %v311
    %v353 = vmul.f32 %v325, %v310
    %v354 = vmul.f32 %v325, %v311
    %v355 = vmul.f32 %v326, %v310
    %v356 = vmul.f32 %v326, %v311
    %v357 = vmul.f32 %v327, %v310
    %v358 = vmul.f32 %v327, %v311
    %v359 = vmul.f32 %v328, %v310
    %v360 = vmul.f32 %v328, %v311
    %v361 = vmul.f32 %v329, 1.442695
    %v362 = vpow.pop %v361
    %v363 = vmul.f32 %v330, 1.442695
    %v364 = vpow.pop %v363
    %v365 = vmul.f32 %v331, 1.442695
    %v366 = vpow.pop %v365
    %v367 = vmul.f32 %v332, 1.442695
    %v368 = vpow.pop %v367
    %v369 = vmul.f32 %v333, 1.442695
    %v370 = vpow.pop %v369
    %v371 = vmul.f32 %v334, 1.442695
    %v372 = vpow.pop %v371
    %v373 = vmul.f32 %v335, 1.442695
    %v374 = vpow.pop %v373
    %v375 = vmul.f32 %v336, 1.442695
    %v376 = vpow.pop %v375
    %v377 = vmul.f32 %v337, 1.442695
    %v378 = vpow.pop %v377
    %v379 = vmul.f32 %v338, 1.442695
    %v380 = vpow.pop %v379
    %v381 = vmul.f32 %v339, 1.442695
    %v382 = vpow.pop %v381
    %v383 = vmul.f32 %v340, 1.442695
    %v384 = vpow.pop %v383
    %v385 = vmul.f32 %v341, 1.442695
    %v386 = vpow.pop %v385
    %v387 = vmul.f32 %v342, 1.442695
    %v388 = vpow.pop %v387
    %v389 = vmul.f32 %v343, 1.442695
    %v390 = vpow.pop %v389
    %v391 = vmul.f32 %v344, 1.442695
    %v392 = vpow.pop %v391
    %v393 = vmul.f32 %v345, 1.442695
    %v394 = vpow.pop %v393
    %v395 = vmul.f32 %v346, 1.442695
    %v396 = vpow.pop %v395
    %v397 = vmul.f32 %v347, 1.442695
    %v398 = vpow.pop %v397
    %v399 = vmul.f32 %v348, 1.442695
    %v400 = vpow.pop %v399
    %v401 = vmul.f32 %v349, 1.442695
    %v402 = vpow.pop %v401
    %v403 = vmul.f32 %v350, 1.442695
    %v404 = vpow.pop %v403
    %v405 = vmul.f32 %v351, 1.442695
    %v406 = vpow.pop %v405
    %v407 = vmul.f32 %v352, 1.442695
    %v408 = vpow.pop %v407
    %v409 = vmul.f32 %v353, 1.442695
    %v410 = vpow.pop %v409
    %v411 = vmul.f32 %v354, 1.442695
    %v412 = vpow.pop %v411
    %v413 = vmul.f32 %v355, 1.442695
    %v414 = vpow.pop %v413
    %v415 = vmul.f32 %v356, 1.442695
    %v416 = vpow.pop %v415
    %v417 = vmul.f32 %v357, 1.442695
    %v418 = vpow.pop %v417
    %v419 = vmul.f32 %v358, 1.442695
    %v420 = vpow.pop %v419
    %v421 = vmul.f32 %v359, 1.442695
    %v422 = vpow.pop %v421
    %v423 = vmul.f32 %v360, 1.442695
    %v424 = vpow.pop %v423
    %425 = vst.msk [vmem:[#allocation2] sm:$0xff] %vm254, %v362
    %426 = vst.msk [vmem:[#allocation2 + $0x8] sm:$0xff] %vm254, %v364
    %427 = vst.msk [vmem:[#allocation2 + $0x10] sm:$0xff] %vm254, %v366
    %428 = vst.msk [vmem:[#allocation2 + $0x18] sm:$0xff] %vm254, %v368
    %429 = vst.msk [vmem:[#allocation2 + $0x20] sm:$0xff] %vm254, %v370
    %430 = vst.msk [vmem:[#allocation2 + $0x28] sm:$0xff] %vm254, %v372
    %431 = vst.msk [vmem:[#allocation2 + $0x30] sm:$0xff] %vm254, %v374
    %432 = vst.msk [vmem:[#allocation2 + $0x38] sm:$0xff] %vm254, %v376
    %433 = vst.msk [vmem:[#allocation2 + $0x40] sm:$0xff] %vm254, %v378
    %434 = vst.msk [vmem:[#allocation2 + $0x48] sm:$0xff] %vm254, %v380
    %435 = vst.msk [vmem:[#allocation2 + $0x50] sm:$0xff] %vm254, %v382
    %436 = vst.msk [vmem:[#allocation2 + $0x58] sm:$0xff] %vm254, %v384
    %437 = vst.msk [vmem:[#allocation2 + $0x60] sm:$0xff] %vm254, %v386
    %438 = vst.msk [vmem:[#allocation2 + $0x68] sm:$0xff] %vm254, %v388
    %439 = vst.msk [vmem:[#allocation2 + $0x70] sm:$0xff] %vm254, %v390
    %440 = vst.msk [vmem:[#allocation2 + $0x78] sm:$0xff] %vm254, %v392
    %441 = vst.msk [vmem:[#allocation2 + $0x80] sm:$0xff] %vm254, %v394
    %442 = vst.msk [vmem:[#allocation2 + $0x88] sm:$0xff] %vm254, %v396
    %443 = vst.msk [vmem:[#allocation2 + $0x90] sm:$0xff] %vm254, %v398
    %444 = vst.msk [vmem:[#allocation2 + $0x98] sm:$0xff] %vm254, %v400
    %445 = vst.msk [vmem:[#allocation2 + $0xa0] sm:$0xff] %vm254, %v402
    %446 = vst.msk [vmem:[#allocation2 + $0xa8] sm:$0xff] %vm254, %v404
    %447 = vst.msk [vmem:[#allocation2 + $0xb0] sm:$0xff] %vm254, %v406
    %448 = vst.msk [vmem:[#allocation2 + $0xb8] sm:$0xff] %vm254, %v408
    %449 = vst.msk [vmem:[#allocation2 + $0xc0] sm:$0xff] %vm254, %v410
    %450 = vst.msk [vmem:[#allocation2 + $0xc8] sm:$0xff] %vm254, %v412
    %451 = vst.msk [vmem:[#allocation2 + $0xd0] sm:$0xff] %vm254, %v414
    %452 = vst.msk [vmem:[#allocation2 + $0xd8] sm:$0xff] %vm254, %v416
    %453 = vst.msk [vmem:[#allocation2 + $0xe0] sm:$0xff] %vm254, %v418
    %454 = vst.msk [vmem:[#allocation2 + $0xe8] sm:$0xff] %vm254, %v420
    %455 = vst.msk [vmem:[#allocation2 + $0xf0] sm:$0xff] %vm254, %v422
    %456 = vst.msk [vmem:[#allocation2 + $0xf8] sm:$0xff] %vm254, %v424
    %v457 = vmul.f32 %v302, %v244
    %v458 = vmul.f32 %v303, %v245
    %461 = vrot.lane.b32.xlu0 %v279, 64
    %v462 = vpop.permute.xlu0 %461
    %463 = vrot.lane.b32.xlu0 %v282, 64
    %v464 = vpop.permute.xlu0 %463
    %467 = vxpose.xlu0.b32.start [1/16] %v462, 128
    %468 = vxpose.xlu0.b32.cont [2/16] %v464, 128
    %469 = vxpose.xlu0.b32.cont [3/16] 0.0, 128
    %470 = vxpose.xlu0.b32.cont [4/16] 0.0, 128
    %471 = vxpose.xlu0.b32.cont [5/16] 0.0, 128
    %472 = vxpose.xlu0.b32.cont [6/16] 0.0, 128
    %473 = vxpose.xlu0.b32.cont [7/16] 0.0, 128
    %474 = vxpose.xlu0.b32.cont [8/16] 0.0, 128
    %475 = vxpose.xlu0.b32.cont [9/16] 0.0, 128
    %476 = vxpose.xlu0.b32.cont [10/16] 0.0, 128
    %477 = vxpose.xlu0.b32.cont [11/16] 0.0, 128
    %478 = vxpose.xlu0.b32.cont [12/16] 0.0, 128
    %479 = vxpose.xlu0.b32.cont [13/16] 0.0, 128
    %480 = vxpose.xlu0.b32.cont [14/16] 0.0, 128
    %481 = vxpose.xlu0.b32.cont [15/16] 0.0, 128
    %482 = vxpose.xlu0.b32.end [16/16] 0.0, 128
    %v483 = vpop.trf.xlu0
    %v484 = vpop.trf.xlu0
    %v485 = vpop.trf.xlu0
    %v486 = vpop.trf.xlu0
    %v487 = vpop.trf.xlu0
    %v488 = vpop.trf.xlu0
    %v489 = vpop.trf.xlu0
    %v490 = vpop.trf.xlu0
    %v491 = vpop.trf.xlu0
    %v492 = vpop.trf.xlu0
    %v493 = vpop.trf.xlu0
    %v494 = vpop.trf.xlu0
    %v495 = vpop.trf.xlu0
    %v496 = vpop.trf.xlu0
    %v497 = vpop.trf.xlu0
    %v498 = vpop.trf.xlu0
    %499 = vrot.lane.b32.xlu0 %v279, 48
    %v500 = vpop.permute.xlu0 %499
    %501 = vrot.lane.b32.xlu0 %v282, 48
    %v502 = vpop.permute.xlu0 %501
    %505 = vxpose.xlu0.b32.start [1/16] %v500, 128
    %506 = vxpose.xlu0.b32.cont [2/16] %v502, 128
    %507 = vxpose.xlu0.b32.cont [3/16] 0.0, 128
    %508 = vxpose.xlu0.b32.cont [4/16] 0.0, 128
    %509 = vxpose.xlu0.b32.cont [5/16] 0.0, 128
    %510 = vxpose.xlu0.b32.cont [6/16] 0.0, 128
    %511 = vxpose.xlu0.b32.cont [7/16] 0.0, 128
    %512 = vxpose.xlu0.b32.cont [8/16] 0.0, 128
    %513 = vxpose.xlu0.b32.cont [9/16] 0.0, 128
    %514 = vxpose.xlu0.b32.cont [10/16] 0.0, 128
    %515 = vxpose.xlu0.b32.cont [11/16] 0.0, 128
    %516 = vxpose.xlu0.b32.cont [12/16] 0.0, 128
    %517 = vxpose.xlu0.b32.cont [13/16] 0.0, 128
    %518 = vxpose.xlu0.b32.cont [14/16] 0.0, 128
    %519 = vxpose.xlu0.b32.cont [15/16] 0.0, 128
    %520 = vxpose.xlu0.b32.end [16/16] 0.0, 128
    %v521 = vpop.trf.xlu0
    %v522 = vpop.trf.xlu0
    %v523 = vpop.trf.xlu0
    %v524 = vpop.trf.xlu0
    %v525 = vpop.trf.xlu0
    %v526 = vpop.trf.xlu0
    %v527 = vpop.trf.xlu0
    %v528 = vpop.trf.xlu0
    %v529 = vpop.trf.xlu0
    %v530 = vpop.trf.xlu0
    %v531 = vpop.trf.xlu0
    %v532 = vpop.trf.xlu0
    %v533 = vpop.trf.xlu0
    %v534 = vpop.trf.xlu0
    %v535 = vpop.trf.xlu0
    %v536 = vpop.trf.xlu0
    %v537 = vld [vmem:[#allocation2] sm:$0xff]
    %v538 = vld [vmem:[#allocation2 + $0x8] sm:$0xff]
    %v539 = vmul.f32 %v537, 0.0
    %v540 = vmul.f32 %v538, 0.0
    %542 = vset.pattern.permute.xlu0 0
    %543 = vperm.xlu0 %542, %v483
    %v544 = vpop.permute.xlu0 %543
    %547 = vset.pattern.permute.xlu0 0
    %548 = vperm.xlu0 %547, %v484
    %v549 = vpop.permute.xlu0 %548
    %v551 = vperm.slane %v457, 0
    %v552 = vmul.f32 %v544, %v551
    %v553 = vmul.f32 %v549, %v551
    %v554 = vadd.f32 %v539, %v552
    %v555 = vadd.f32 %v540, %v553
    %557 = vset.pattern.permute.xlu0 0
    %558 = vperm.xlu0 %557, %v521
    %v559 = vpop.permute.xlu0 %558
    %562 = vset.pattern.permute.xlu0 0
    %563 = vperm.xlu0 %562, %v522
    %v564 = vpop.permute.xlu0 %563
    %v566 = vmul.f32 %v559, %v554
    %v567 = vmul.f32 %v564, %v555
    %v568 = vsel %vm254, %v566, 0.0
    %v569 = vsel %vm254, %v567, 0.0
    %v570 = vadd.f32 %v568, %v569
    %v571 = vrot.slane %v570, 4
    %v572 = vadd.f32 %v570, %v571
    %v573 = vrot.slane %v572, 2
    %v574 = vadd.f32 %v572, %v573
    %v575 = vrot.slane %v574, 1
    %v576 = vadd.f32 %v574, %v575
    %vm577 = vcmask 516096
    %578 = vst.msk [vmem:[#allocation3] sm:$0x1] %vm577, %v576
    %v579 = vld [vmem:[#allocation2 + $0x10] sm:$0xff]
    %v580 = vld [vmem:[#allocation2 + $0x18] sm:$0xff]
    %v581 = vmul.f32 %v579, %v554
    %v582 = vmul.f32 %v580, %v555
    %583 = vset.pattern.permute.xlu0 1
    %584 = vperm.xlu0 %583, %v483
    %v585 = vpop.permute.xlu0 %584
    %587 = vset.pattern.permute.xlu0 1
    %588 = vperm.xlu0 %587, %v484
    %v589 = vpop.permute.xlu0 %588
    %v591 = vperm.slane %v457, 1
    %v592 = vmul.f32 %v585, %v591
    %v593 = vmul.f32 %v589, %v591
    %v594 = vadd.f32 %v581, %v592
    %v595 = vadd.f32 %v582, %v593
    %596 = vset.pattern.permute.xlu0 1
    %597 = vperm.xlu0 %596, %v521
    %v598 = vpop.permute.xlu0 %597
    %600 = vset.pattern.permute.xlu0 1
    %601 = vperm.xlu0 %600, %v522
    %v602 = vpop.permute.xlu0 %601
    %v604 = vmul.f32 %v598, %v594
    %v605 = vmul.f32 %v602, %v595
    %v606 = vsel %vm254, %v604, 0.0
    %v607 = vsel %vm254, %v605, 0.0
    %v608 = vadd.f32 %v606, %v607
    %v609 = vrot.slane %v608, 4
    %v610 = vadd.f32 %v608, %v609
    %v611 = vrot.slane %v610, 2
    %v612 = vadd.f32 %v610, %v611
    %v613 = vrot.slane %v612, 1
    %v614 = vadd.f32 %v612, %v613
    %615 = vst.msk [vmem:[#allocation3 + $0x1] sm:$0x1] %vm577, %v614
    %v616 = vld [vmem:[#allocation2 + $0x20] sm:$0xff]
    %v617 = vld [vmem:[#allocation2 + $0x28] sm:$0xff]
    %v618 = vmul.f32 %v616, %v594
    %v619 = vmul.f32 %v617, %v595
    %620 = vset.pattern.permute.xlu0 2
    %621 = vperm.xlu0 %620, %v483
    %v622 = vpop.permute.xlu0 %621
    %624 = vset.pattern.permute.xlu0 2
    %625 = vperm.xlu0 %624, %v484
    %v626 = vpop.permute.xlu0 %625
    %v628 = vperm.slane %v457, 2
    %v629 = vmul.f32 %v622, %v628
    %v630 = vmul.f32 %v626, %v628
    %v631 = vadd.f32 %v618, %v629
    %v632 = vadd.f32 %v619, %v630
    %633 = vset.pattern.permute.xlu0 2
    %634 = vperm.xlu0 %633, %v521
    %v635 = vpop.permute.xlu0 %634
    %637 = vset.pattern.permute.xlu0 2
    %638 = vperm.xlu0 %637, %v522
    %v639 = vpop.permute.xlu0 %638
    %v641 = vmul.f32 %v635, %v631
    %v642 = vmul.f32 %v639, %v632
    %v643 = vsel %vm254, %v641, 0.0
    %v644 = vsel %vm254, %v642, 0.0
    %v645 = vadd.f32 %v643, %v644
    %v646 = vrot.slane %v645, 4
    %v647 = vadd.f32 %v645, %v646
    %v648 = vrot.slane %v647, 2
    %v649 = vadd.f32 %v647, %v648
    %v650 = vrot.slane %v649, 1
    %v651 = vadd.f32 %v649, %v650
    %652 = vst.msk [vmem:[#allocation3 + $0x2] sm:$0x1] %vm577, %v651
    %v653 = vld [vmem:[#allocation2 + $0x30] sm:$0xff]
    %v654 = vld [vmem:[#allocation2 + $0x38] sm:$0xff]
    %v655 = vmul.f32 %v653, %v631
    %v656 = vmul.f32 %v654, %v632
    %657 = vset.pattern.permute.xlu0 3
    %658 = vperm.xlu0 %657, %v483
    %v659 = vpop.permute.xlu0 %658
    %661 = vset.pattern.permute.xlu0 3
    %662 = vperm.xlu0 %661, %v484
    %v663 = vpop.permute.xlu0 %662
    %v665 = vperm.slane %v457, 3
    %v666 = vmul.f32 %v659, %v665
    %v667 = vmul.f32 %v663, %v665
    %v668 = vadd.f32 %v655, %v666
    %v669 = vadd.f32 %v656, %v667
    %670 = vset.pattern.permute.xlu0 3
    %671 = vperm.xlu0 %670, %v521
    %v672 = vpop.permute.xlu0 %671
    %674 = vset.pattern.permute.xlu0 3
    %675 = vperm.xlu0 %674, %v522
    %v676 = vpop.permute.xlu0 %675
    %v678 = vmul.f32 %v672, %v668
    %v679 = vmul.f32 %v676, %v669
    %v680 = vsel %vm254, %v678, 0.0
    %v681 = vsel %vm254, %v679, 0.0
    %v682 = vadd.f32 %v680, %v681
    %v683 = vrot.slane %v682, 4
    %v684 = vadd.f32 %v682, %v683
    %v685 = vrot.slane %v684, 2
    %v686 = vadd.f32 %v684, %v685
    %v687 = vrot.slane %v686, 1
    %v688 = vadd.f32 %v686, %v687
    %689 = vst.msk [vmem:[#allocation3 + $0x3] sm:$0x1] %vm577, %v688
    %v690 = vld [vmem:[#allocation2 + $0x40] sm:$0xff]
    %v691 = vld [vmem:[#allocation2 + $0x48] sm:$0xff]
    %v692 = vmul.f32 %v690, %v668
    %v693 = vmul.f32 %v691, %v669
    %694 = vset.pattern.permute.xlu0 4
    %695 = vperm.xlu0 %694, %v483
    %v696 = vpop.permute.xlu0 %695
    %698 = vset.pattern.permute.xlu0 4
    %699 = vperm.xlu0 %698, %v484
    %v700 = vpop.permute.xlu0 %699
    %v702 = vperm.slane %v457, 4
    %v703 = vmul.f32 %v696, %v702
    %v704 = vmul.f32 %v700, %v702
    %v705 = vadd.f32 %v692, %v703
    %v706 = vadd.f32 %v693, %v704
    %707 = vset.pattern.permute.xlu0 4
    %708 = vperm.xlu0 %707, %v521
    %v709 = vpop.permute.xlu0 %708
    %711 = vset.pattern.permute.xlu0 4
    %712 = vperm.xlu0 %711, %v522
    %v713 = vpop.permute.xlu0 %712
    %v715 = vmul.f32 %v709, %v705
    %v716 = vmul.f32 %v713, %v706
    %v717 = vsel %vm254, %v715, 0.0
    %v718 = vsel %vm254, %v716, 0.0
    %v719 = vadd.f32 %v717, %v718
    %v720 = vrot.slane %v719, 4
    %v721 = vadd.f32 %v719, %v720
    %v722 = vrot.slane %v721, 2
    %v723 = vadd.f32 %v721, %v722
    %v724 = vrot.slane %v723, 1
    %v725 = vadd.f32 %v723, %v724
    %726 = vst.msk [vmem:[#allocation3 + $0x4] sm:$0x1] %vm577, %v725
    %v727 = vld [vmem:[#allocation2 + $0x50] sm:$0xff]
    %v728 = vld [vmem:[#allocation2 + $0x58] sm:$0xff]
    %v729 = vmul.f32 %v727, %v705
    %v730 = vmul.f32 %v728, %v706
    %731 = vset.pattern.permute.xlu0 5
    %732 = vperm.xlu0 %731, %v483
    %v733 = vpop.permute.xlu0 %732
    %735 = vset.pattern.permute.xlu0 5
    %736 = vperm.xlu0 %735, %v484
    %v737 = vpop.permute.xlu0 %736
    %v739 = vperm.slane %v457, 5
    %v740 = vmul.f32 %v733, %v739
    %v741 = vmul.f32 %v737, %v739
    %v742 = vadd.f32 %v729, %v740
    %v743 = vadd.f32 %v730, %v741
    %744 = vset.pattern.permute.xlu0 5
    %745 = vperm.xlu0 %744, %v521
    %v746 = vpop.permute.xlu0 %745
    %748 = vset.pattern.permute.xlu0 5
    %749 = vperm.xlu0 %748, %v522
    %v750 = vpop.permute.xlu0 %749
    %v752 = vmul.f32 %v746, %v742
    %v753 = vmul.f32 %v750, %v743
    %v754 = vsel %vm254, %v752, 0.0
    %v755 = vsel %vm254, %v753, 0.0
    %v756 = vadd.f32 %v754, %v755
    %v757 = vrot.slane %v756, 4
    %v758 = vadd.f32 %v756, %v757
    %v759 = vrot.slane %v758, 2
    %v760 = vadd.f32 %v758, %v759
    %v761 = vrot.slane %v760, 1
    %v762 = vadd.f32 %v760, %v761
    %763 = vst.msk [vmem:[#allocation3 + $0x5] sm:$0x1] %vm577, %v762
    %v764 = vld [vmem:[#allocation2 + $0x60] sm:$0xff]
    %v765 = vld [vmem:[#allocation2 + $0x68] sm:$0xff]
    %v766 = vmul.f32 %v764, %v742
    %v767 = vmul.f32 %v765, %v743
    %768 = vset.pattern.permute.xlu0 6
    %769 = vperm.xlu0 %768, %v483
    %v770 = vpop.permute.xlu0 %769
    %772 = vset.pattern.permute.xlu0 6
    %773 = vperm.xlu0 %772, %v484
    %v774 = vpop.permute.xlu0 %773
    %v776 = vperm.slane %v457, 6
    %v777 = vmul.f32 %v770, %v776
    %v778 = vmul.f32 %v774, %v776
    %v779 = vadd.f32 %v766, %v777
    %v780 = vadd.f32 %v767, %v778
    %781 = vset.pattern.permute.xlu0 6
    %782 = vperm.xlu0 %781, %v521
    %v783 = vpop.permute.xlu0 %782
    %785 = vset.pattern.permute.xlu0 6
    %786 = vperm.xlu0 %785, %v522
    %v787 = vpop.permute.xlu0 %786
    %v789 = vmul.f32 %v783, %v779
    %v790 = vmul.f32 %v787, %v780
    %v791 = vsel %vm254, %v789, 0.0
    %v792 = vsel %vm254, %v790, 0.0
    %v793 = vadd.f32 %v791, %v792
    %v794 = vrot.slane %v793, 4
    %v795 = vadd.f32 %v793, %v794
    %v796 = vrot.slane %v795, 2
    %v797 = vadd.f32 %v795, %v796
    %v798 = vrot.slane %v797, 1
    %v799 = vadd.f32 %v797, %v798
    %800 = vst.msk [vmem:[#allocation3 + $0x6] sm:$0x1] %vm577, %v799
    %v801 = vld [vmem:[#allocation2 + $0x70] sm:$0xff]
    %v802 = vld [vmem:[#allocation2 + $0x78] sm:$0xff]
    %v803 = vmul.f32 %v801, %v779
    %v804 = vmul.f32 %v802, %v780
    %805 = vset.pattern.permute.xlu0 7
    %806 = vperm.xlu0 %805, %v483
    %v807 = vpop.permute.xlu0 %806
    %809 = vset.pattern.permute.xlu0 7
    %810 = vperm.xlu0 %809, %v484
    %v811 = vpop.permute.xlu0 %810
    %v813 = vperm.slane %v457, 7
    %v814 = vmul.f32 %v807, %v813
    %v815 = vmul.f32 %v811, %v813
    %v816 = vadd.f32 %v803, %v814
    %v817 = vadd.f32 %v804, %v815
    %818 = vset.pattern.permute.xlu0 7
    %819 = vperm.xlu0 %818, %v521
    %v820 = vpop.permute.xlu0 %819
    %822 = vset.pattern.permute.xlu0 7
    %823 = vperm.xlu0 %822, %v522
    %v824 = vpop.permute.xlu0 %823
    %v826 = vmul.f32 %v820, %v816
    %v827 = vmul.f32 %v824, %v817
    %v828 = vsel %vm254, %v826, 0.0
    %v829 = vsel %vm254, %v827, 0.0
    %v830 = vadd.f32 %v828, %v829
    %v831 = vrot.slane %v830, 4
    %v832 = vadd.f32 %v830, %v831
    %v833 = vrot.slane %v832, 2
    %v834 = vadd.f32 %v832, %v833
    %v835 = vrot.slane %v834, 1
    %v836 = vadd.f32 %v834, %v835
    %837 = vst.msk [vmem:[#allocation3 + $0x7] sm:$0x1] %vm577, %v836
    %v838 = vld [vmem:[#allocation2 + $0x80] sm:$0xff]
    %v839 = vld [vmem:[#allocation2 + $0x88] sm:$0xff]
    %v840 = vmul.f32 %v838, 0.0
    %v841 = vmul.f32 %v839, 0.0
    %842 = vset.pattern.permute.xlu0 8
    %843 = vperm.xlu0 %842, %v483
    %v844 = vpop.permute.xlu0 %843
    %846 = vset.pattern.permute.xlu0 8
    %847 = vperm.xlu0 %846, %v484
    %v848 = vpop.permute.xlu0 %847
    %v850 = vperm.slane %v458, 0
    %v851 = vmul.f32 %v844, %v850
    %v852 = vmul.f32 %v848, %v850
    %v853 = vadd.f32 %v840, %v851
    %v854 = vadd.f32 %v841, %v852
    %855 = vset.pattern.permute.xlu0 8
    %856 = vperm.xlu0 %855, %v521
    %v857 = vpop.permute.xlu0 %856
    %859 = vset.pattern.permute.xlu0 8
    %860 = vperm.xlu0 %859, %v522
    %v861 = vpop.permute.xlu0 %860
    %v863 = vmul.f32 %v857, %v853
    %v864 = vmul.f32 %v861, %v854
    %v865 = vsel %vm254, %v863, 0.0
    %v866 = vsel %vm254, %v864, 0.0
    %v867 = vadd.f32 %v865, %v866
    %v868 = vrot.slane %v867, 4
    %v869 = vadd.f32 %v867, %v868
    %v870 = vrot.slane %v869, 2
    %v871 = vadd.f32 %v869, %v870
    %v872 = vrot.slane %v871, 1
    %v873 = vadd.f32 %v871, %v872
    %874 = vst.msk [vmem:[#allocation3 + $0x8] sm:$0x1] %vm577, %v873
    %v875 = vld [vmem:[#allocation2 + $0x90] sm:$0xff]
    %v876 = vld [vmem:[#allocation2 + $0x98] sm:$0xff]
    %v877 = vmul.f32 %v875, %v853
    %v878 = vmul.f32 %v876, %v854
    %879 = vset.pattern.permute.xlu0 9
    %880 = vperm.xlu0 %879, %v483
    %v881 = vpop.permute.xlu0 %880
    %883 = vset.pattern.permute.xlu0 9
    %884 = vperm.xlu0 %883, %v484
    %v885 = vpop.permute.xlu0 %884
    %v887 = vperm.slane %v458, 1
    %v888 = vmul.f32 %v881, %v887
    %v889 = vmul.f32 %v885, %v887
    %v890 = vadd.f32 %v877, %v888
    %v891 = vadd.f32 %v878, %v889
    %892 = vset.pattern.permute.xlu0 9
    %893 = vperm.xlu0 %892, %v521
    %v894 = vpop.permute.xlu0 %893
    %896 = vset.pattern.permute.xlu0 9
    %897 = vperm.xlu0 %896, %v522
    %v898 = vpop.permute.xlu0 %897
    %v900 = vmul.f32 %v894, %v890
    %v901 = vmul.f32 %v898, %v891
    %v902 = vsel %vm254, %v900, 0.0
    %v903 = vsel %vm254, %v901, 0.0
    %v904 = vadd.f32 %v902, %v903
    %v905 = vrot.slane %v904, 4
    %v906 = vadd.f32 %v904, %v905
    %v907 = vrot.slane %v906, 2
    %v908 = vadd.f32 %v906, %v907
    %v909 = vrot.slane %v908, 1
    %v910 = vadd.f32 %v908, %v909
    %911 = vst.msk [vmem:[#allocation3 + $0x9] sm:$0x1] %vm577, %v910
    %v912 = vld [vmem:[#allocation2 + $0xa0] sm:$0xff]
    %v913 = vld [vmem:[#allocation2 + $0xa8] sm:$0xff]
    %v914 = vmul.f32 %v912, %v890
    %v915 = vmul.f32 %v913, %v891
    %916 = vset.pattern.permute.xlu0 10
    %917 = vperm.xlu0 %916, %v483
    %v918 = vpop.permute.xlu0 %917
    %920 = vset.pattern.permute.xlu0 10
    %921 = vperm.xlu0 %920, %v484
    %v922 = vpop.permute.xlu0 %921
    %v924 = vperm.slane %v458, 2
    %v925 = vmul.f32 %v918, %v924
    %v926 = vmul.f32 %v922, %v924
    %v927 = vadd.f32 %v914, %v925
    %v928 = vadd.f32 %v915, %v926
    %929 = vset.pattern.permute.xlu0 10
    %930 = vperm.xlu0 %929, %v521
    %v931 = vpop.permute.xlu0 %930
    %933 = vset.pattern.permute.xlu0 10
    %934 = vperm.xlu0 %933, %v522
    %v935 = vpop.permute.xlu0 %934
    %v937 = vmul.f32 %v931, %v927
    %v938 = vmul.f32 %v935, %v928
    %v939 = vsel %vm254, %v937, 0.0
    %v940 = vsel %vm254, %v938, 0.0
    %v941 = vadd.f32 %v939, %v940
    %v942 = vrot.slane %v941, 4
    %v943 = vadd.f32 %v941, %v942
    %v944 = vrot.slane %v943, 2
    %v945 = vadd.f32 %v943, %v944
    %v946 = vrot.slane %v945, 1
    %v947 = vadd.f32 %v945, %v946
    %948 = vst.msk [vmem:[#allocation3 + $0xa] sm:$0x1] %vm577, %v947
    %v949 = vld [vmem:[#allocation2 + $0xb0] sm:$0xff]
    %v950 = vld [vmem:[#allocation2 + $0xb8] sm:$0xff]
    %v951 = vmul.f32 %v949, %v927
    %v952 = vmul.f32 %v950, %v928
    %953 = vset.pattern.permute.xlu0 11
    %954 = vperm.xlu0 %953, %v483
    %v955 = vpop.permute.xlu0 %954
    %957 = vset.pattern.permute.xlu0 11
    %958 = vperm.xlu0 %957, %v484
    %v959 = vpop.permute.xlu0 %958
    %v961 = vperm.slane %v458, 3
    %v962 = vmul.f32 %v955, %v961
    %v963 = vmul.f32 %v959, %v961
    %v964 = vadd.f32 %v951, %v962
    %v965 = vadd.f32 %v952, %v963
    %966 = vset.pattern.permute.xlu0 11
    %967 = vperm.xlu0 %966, %v521
    %v968 = vpop.permute.xlu0 %967
    %970 = vset.pattern.permute.xlu0 11
    %971 = vperm.xlu0 %970, %v522
    %v972 = vpop.permute.xlu0 %971
    %v974 = vmul.f32 %v968, %v964
    %v975 = vmul.f32 %v972, %v965
    %v976 = vsel %vm254, %v974, 0.0
    %v977 = vsel %vm254, %v975, 0.0
    %v978 = vadd.f32 %v976, %v977
    %v979 = vrot.slane %v978, 4
    %v980 = vadd.f32 %v978, %v979
    %v981 = vrot.slane %v980, 2
    %v982 = vadd.f32 %v980, %v981
    %v983 = vrot.slane %v982, 1
    %v984 = vadd.f32 %v982, %v983
    %985 = vst.msk [vmem:[#allocation3 + $0xb] sm:$0x1] %vm577, %v984
    %v986 = vld [vmem:[#allocation2 + $0xc0] sm:$0xff]
    %v987 = vld [vmem:[#allocation2 + $0xc8] sm:$0xff]
    %v988 = vmul.f32 %v986, %v964
    %v989 = vmul.f32 %v987, %v965
    %990 = vset.pattern.permute.xlu0 12
    %991 = vperm.xlu0 %990, %v483
    %v992 = vpop.permute.xlu0 %991
    %994 = vset.pattern.permute.xlu0 12
    %995 = vperm.xlu0 %994, %v484
    %v996 = vpop.permute.xlu0 %995
    %v998 = vperm.slane %v458, 4
    %v999 = vmul.f32 %v992, %v998
    %v1000 = vmul.f32 %v996, %v998
    %v1001 = vadd.f32 %v988, %v999
    %v1002 = vadd.f32 %v989, %v1000
    %1003 = vset.pattern.permute.xlu0 12
    %1004 = vperm.xlu0 %1003, %v521
    %v1005 = vpop.permute.xlu0 %1004
    %1007 = vset.pattern.permute.xlu0 12
    %1008 = vperm.xlu0 %1007, %v522
    %v1009 = vpop.permute.xlu0 %1008
    %v1011 = vmul.f32 %v1005, %v1001
    %v1012 = vmul.f32 %v1009, %v1002
    %v1013 = vsel %vm254, %v1011, 0.0
    %v1014 = vsel %vm254, %v1012, 0.0
    %v1015 = vadd.f32 %v1013, %v1014
    %v1016 = vrot.slane %v1015, 4
    %v1017 = vadd.f32 %v1015, %v1016
    %v1018 = vrot.slane %v1017, 2
    %v1019 = vadd.f32 %v1017, %v1018
    %v1020 = vrot.slane %v1019, 1
    %v1021 = vadd.f32 %v1019, %v1020
    %1022 = vst.msk [vmem:[#allocation3 + $0xc] sm:$0x1] %vm577, %v1021
    %v1023 = vld [vmem:[#allocation2 + $0xd0] sm:$0xff]
    %v1024 = vld [vmem:[#allocation2 + $0xd8] sm:$0xff]
    %v1025 = vmul.f32 %v1023, %v1001
    %v1026 = vmul.f32 %v1024, %v1002
    %1027 = vset.pattern.permute.xlu0 13
    %1028 = vperm.xlu0 %1027, %v483
    %v1029 = vpop.permute.xlu0 %1028
    %1031 = vset.pattern.permute.xlu0 13
    %1032 = vperm.xlu0 %1031, %v484
    %v1033 = vpop.permute.xlu0 %1032
    %v1035 = vperm.slane %v458, 5
    %v1036 = vmul.f32 %v1029, %v1035
    %v1037 = vmul.f32 %v1033, %v1035
    %v1038 = vadd.f32 %v1025, %v1036
    %v1039 = vadd.f32 %v1026, %v1037
    %1040 = vset.pattern.permute.xlu0 13
    %1041 = vperm.xlu0 %1040, %v521
    %v1042 = vpop.permute.xlu0 %1041
    %1044 = vset.pattern.permute.xlu0 13
    %1045 = vperm.xlu0 %1044, %v522
    %v1046 = vpop.permute.xlu0 %1045
    %v1048 = vmul.f32 %v1042, %v1038
    %v1049 = vmul.f32 %v1046, %v1039
    %v1050 = vsel %vm254, %v1048, 0.0
    %v1051 = vsel %vm254, %v1049, 0.0
    %v1052 = vadd.f32 %v1050, %v1051
    %v1053 = vrot.slane %v1052, 4
    %v1054 = vadd.f32 %v1052, %v1053
    %v1055 = vrot.slane %v1054, 2
    %v1056 = vadd.f32 %v1054, %v1055
    %v1057 = vrot.slane %v1056, 1
    %v1058 = vadd.f32 %v1056, %v1057
    %1059 = vst.msk [vmem:[#allocation3 + $0xd] sm:$0x1] %vm577, %v1058
    %v1060 = vld [vmem:[#allocation2 + $0xe0] sm:$0xff]
    %v1061 = vld [vmem:[#allocation2 + $0xe8] sm:$0xff]
    %v1062 = vmul.f32 %v1060, %v1038
    %v1063 = vmul.f32 %v1061, %v1039
    %1064 = vset.pattern.permute.xlu0 14
    %1065 = vperm.xlu0 %1064, %v483
    %v1066 = vpop.permute.xlu0 %1065
    %1068 = vset.pattern.permute.xlu0 14
    %1069 = vperm.xlu0 %1068, %v484
    %v1070 = vpop.permute.xlu0 %1069
    %v1072 = vperm.slane %v458, 6
    %v1073 = vmul.f32 %v1066, %v1072
    %v1074 = vmul.f32 %v1070, %v1072
    %v1075 = vadd.f32 %v1062, %v1073
    %v1076 = vadd.f32 %v1063, %v1074
    %1077 = vset.pattern.permute.xlu0 14
    %1078 = vperm.xlu0 %1077, %v521
    %v1079 = vpop.permute.xlu0 %1078
    %1081 = vset.pattern.permute.xlu0 14
    %1082 = vperm.xlu0 %1081, %v522
    %v1083 = vpop.permute.xlu0 %1082
    %v1085 = vmul.f32 %v1079, %v1075
    %v1086 = vmul.f32 %v1083, %v1076
    %v1087 = vsel %vm254, %v1085, 0.0
    %v1088 = vsel %vm254, %v1086, 0.0
    %v1089 = vadd.f32 %v1087, %v1088
    %v1090 = vrot.slane %v1089, 4
    %v1091 = vadd.f32 %v1089, %v1090
    %v1092 = vrot.slane %v1091, 2
    %v1093 = vadd.f32 %v1091, %v1092
    %v1094 = vrot.slane %v1093, 1
    %v1095 = vadd.f32 %v1093, %v1094
    %1096 = vst.msk [vmem:[#allocation3 + $0xe] sm:$0x1] %vm577, %v1095
    %v1097 = vld [vmem:[#allocation2 + $0xf0] sm:$0xff]
    %v1098 = vld [vmem:[#allocation2 + $0xf8] sm:$0xff]
    %v1099 = vmul.f32 %v1097, %v1075
    %v1100 = vmul.f32 %v1098, %v1076
    %1101 = vset.pattern.permute.xlu0 15
    %1102 = vperm.xlu0 %1101, %v483
    %v1103 = vpop.permute.xlu0 %1102
    %1105 = vset.pattern.permute.xlu0 15
    %1106 = vperm.xlu0 %1105, %v484
    %v1107 = vpop.permute.xlu0 %1106
    %v1109 = vperm.slane %v458, 7
    %v1110 = vmul.f32 %v1103, %v1109
    %v1111 = vmul.f32 %v1107, %v1109
    %v1112 = vadd.f32 %v1099, %v1110
    %v1113 = vadd.f32 %v1100, %v1111
    %1114 = vset.pattern.permute.xlu0 15
    %1115 = vperm.xlu0 %1114, %v521
    %v1116 = vpop.permute.xlu0 %1115
    %1118 = vset.pattern.permute.xlu0 15
    %1119 = vperm.xlu0 %1118, %v522
    %v1120 = vpop.permute.xlu0 %1119
    %v1122 = vmul.f32 %v1116, %v1112
    %v1123 = vmul.f32 %v1120, %v1113
    %v1124 = vsel %vm254, %v1122, 0.0
    %v1125 = vsel %vm254, %v1123, 0.0
    %v1126 = vadd.f32 %v1124, %v1125
    %v1127 = vrot.slane %v1126, 4
    %v1128 = vadd.f32 %v1126, %v1127
    %v1129 = vrot.slane %v1128, 2
    %v1130 = vadd.f32 %v1128, %v1129
    %v1131 = vrot.slane %v1130, 1
    %v1132 = vadd.f32 %v1130, %v1131
    %1133 = vst.msk [vmem:[#allocation3 + $0xf] sm:$0x1] %vm577, %v1132
    %v1134 = vld [vmem:[#allocation3] sm:$0xff]
    %v1135 = vld [vmem:[#allocation3 + $0x8] sm:$0xff]
    %v1136 = vperm.slane %v312, 0
    %v1137 = vmul.f32 %v1136, %v244
    %v1138 = vmul.f32 %v1136, %v245
    %v1139 = vadd.f32 %v1134, %v1137
    %v1140 = vadd.f32 %v1135, %v1138
    %v1141 = vsub.f32 0.0, %v147
    %v1142 = vsub.f32 0.0, %v150
    %v1143 = vmul.f32 %v1141, 1.442695
    %v1144 = vpow.pop %v1143
    %v1145 = vmul.f32 %v1142, 1.442695
    %v1146 = vpow.pop %v1145
    %v1147 = vadd.f32 %v1144, 1.0
    %v1148 = vadd.f32 %v1146, 1.0
    %v1149 = vrcp.pop %v1147
    %v1150 = vrcp.pop %v1148
    %v1151 = vmul.f32 %v147, %v1149
    %v1152 = vmul.f32 %v150, %v1150
    %1155 = vrot.lane.b32.xlu0 %v1151, 64
    %v1156 = vpop.permute.xlu0 %1155
    %1157 = vrot.lane.b32.xlu0 %v1152, 64
    %v1158 = vpop.permute.xlu0 %1157
    %v1161 = vmul.f32 %v1139, %v1156
    %v1162 = vmul.f32 %v1140, %v1158
    %v1163 = vld [vmem:[#allocation13] sm:$0xff]
    %v1164 = vld [vmem:[#allocation13 + $0x8] sm:$0xff]
    %v1165 = vld [vmem:[#allocation13 + $0x10] sm:$0xff]
    %v1166 = vld [vmem:[#allocation13 + $0x18] sm:$0xff]
    %v1167 = vld [vmem:[#allocation13 + $0x20] sm:$0xff]
    %v1168 = vld [vmem:[#allocation13 + $0x28] sm:$0xff]
    %v1169 = vld [vmem:[#allocation13 + $0x30] sm:$0xff]
    %v1170 = vld [vmem:[#allocation13 + $0x38] sm:$0xff]
    %v1172 = vsel %vm254, %v1161, 0
    %v1175 = vsel %vm254, %v1162, 0
    %1177 = vmatpush.msra.mxu0 0.0
    %1178 = vmatpush.msra.mxu0 0.0
    %1179 = vmatpush.msra.mxu0 0.0
    %1180 = vmatpush.msra.mxu0 0.0
    %1181 = vmatpush.msra.mxu0 0.0
    %1182 = vmatpush.msra.mxu0 0.0
    %1183 = vmatpush.msra.mxu0 0.0
    %1184 = vmatpush.msra.mxu0 0.0
    %1185 = vmatpush.msra.mxu0 %v1170
    %1186 = vmatpush.msra.mxu0 %v1169
    %1187 = vmatpush.msra.mxu0 %v1168
    %1188 = vmatpush.msra.mxu0 %v1167
    %1189 = vmatpush.msra.mxu0 %v1166
    %1190 = vmatpush.msra.mxu0 %v1165
    %1191 = vmatpush.msra.mxu0 %v1164
    %1192 = vmatpush.msra.mxu0 %v1163
    %1193 = vmatmul.f32.gmra.mxu0 %v1172
    %v1194 = vpop.f32.mrf.mxu0
    %v1195 = vadd.f32 0.0, %v1194
    %1196 = vmatmul.f32.gmra.mxu0 %v1175
    %v1197 = vpop.f32.mrf.mxu0
    %v1198 = vadd.f32 0.0, %v1197
    %1199 = vdwg.mxu0
    %1200 = vst [vmem:[#allocation15] sm:$0xff] %v1195
    %1201 = vst [vmem:[#allocation15 + $0x8] sm:$0xff] %v1198
    // Predicated region
    $region50: #{tpu_custom_call.1} parent=1 // pred_check
      _
    $region51: #{tpu_custom_call.1} parent=1 // pred_check_branch
      %1203 = sbr.rel (0) target = $region53
    $region52: #{tpu_custom_call.1} parent=1 // pred_region
      %1205 = vsyncadd [#allocation6], 0
      %s1206 = sshll.u32 [#allocation15], 4
      %s1207 = int_to_ptr.vmem [resolvable:$true] %s1206
      %s1208 = sshll.u32 %s6, 4
      %s1209 = int_to_ptr.hbm [resolvable:$true] %s1208
      %1214 = dma.vmem_to_hbm [thread:$0]  %s1207, 256, %s1209, [#allocation6], 128, 128, 8
    $region53: #{tpu_custom_call.1} parent=1 // pred_fallthru
      _
    // Predicated region
    $region54: #{tpu_custom_call.1} parent=1 // pred_check
      _
    $region55: #{tpu_custom_call.1} parent=1 // pred_check_branch
      %1216 = sbr.rel (0) target = $region57
    $region56: #{tpu_custom_call.1} parent=1 // pred_region
      %1218 = dma.done [#allocation6], 256
    $region57: #{tpu_custom_call.1} parent=1 // pred_fallthru
      _
    %1219 = vsyncpa [#allocation5], 1
    %1220 = vsyncpa [#allocation8], 1
    %1221 = vsyncpa [#allocation11], 1
    %1222 = vsyncpa [#allocation14], 1
    %1223 = vsyncpa [#allocation6], 1

</llo_original>
